<compile_context>
chip_gen: v7x
topology: tpu7x:2x2x1
jax: 0.10.0
libtpu: 0.0.40
codegen_flags: <defaults>
</compile_context>

<pallas_src>
from functools import partial
import math

import jax
import jax.numpy as jnp
from jax import lax
from jax.experimental import pallas as pl
from jax.experimental.pallas import tpu as pltpu

EPS = 1e-5


def _resnet_block_kernel(xp_ref,    # (N, H+2, W*Cin_p)  compute dtype (H-padded, W folded)
                         w1r_ref,   # (3*W*Cin_p, 2L)    ky-folded conv1 Toeplitz ++ residual 1x1
                         w2_ref,    # (3*L, L)           ky-folded conv2 Toeplitz
                         bias_ref,  # (3, L) fp32        rows: b1, b2, br (lane-tiled)
                         gb_ref,    # (4, C) fp32        rows: g1, be1, g2, be2
                         pool_ref,  # (L, C) fp32        constant pooling (w, c) -> c
                         o_ref,     # (N, H, L) fp32     lane-dense output
                         hpad_ref): # scratch (N, H+2, L) compute dtype
    N, Hp, _ = xp_ref.shape
    H = Hp - 2
    R = N * H                       # rows of the flattened activation slabs
    L = o_ref.shape[-1]             # W * Cout (lane-dense width, multiple of 128)
    C = gb_ref.shape[-1]            # Cout
    W = L // C
    inv_p = 1.0 / (R * W)           # 1 / (N*H*W)
    f32 = jnp.float32

    def shifted_cat(src_ref):
        # Deep-K MXU LHS: the 3 H-shifted row slabs concatenated on the minor
        # dim -> ONE matmul with K = 3*minor instead of 3 shallow matmuls.
        return jnp.concatenate(
            [src_ref[:, dy:dy + H, :].reshape(R, -1) for dy in range(3)], axis=-1)

    def batchnorm(h, g, be):
        # Training-mode BN over the full batch. Single fused pass: sum and
        # sum-of-squares pooled per channel with ONE M=2 constant matmul.
        # NOTE: one-pass E[x^2]-E[x]^2 form; switch to a centered second pass
        # (or Welford) when gridding at production slab sizes.
        s1 = jnp.sum(h, axis=0, keepdims=True)                  # (1, L)
        s2 = jnp.sum(h * h, axis=0, keepdims=True)              # (1, L)
        pooled = jnp.dot(jnp.concatenate([s1, s2], axis=0), pool_ref[...],
                         preferred_element_type=f32) * inv_p    # (2, C)
        mean, msq = pooled[0:1], pooled[1:2]
        var = msq - mean * mean
        scale = g * lax.rsqrt(var + EPS)                        # (1, C)
        shift = be - mean * scale                               # (1, C)
        ss = jnp.tile(jnp.concatenate([scale, shift], axis=0), (1, W))  # (2, L)
        return h * ss[0:1] + ss[1:2]                            # fused FMA

    # ---- conv1 (+ fused residual 1x1) -> BN1 -> ReLU ------------------------
    f1 = jnp.dot(shifted_cat(xp_ref), w1r_ref[...],
                 preferred_element_type=f32)                    # (R, 2L)
    h1 = f1[:, :L] + bias_ref[0:1]
    res = f1[:, L:] + bias_ref[2:3]                             # residual branch
    h1 = jnp.maximum(batchnorm(h1, gb_ref[0:1], gb_ref[1:2]), 0.0)

    # ---- H-pad h1 via scratch: zero ONLY the two halo rows, write interior --
    zrow = jnp.zeros((N, 1, L), hpad_ref.dtype)
    hpad_ref[:, 0:1, :] = zrow
    hpad_ref[:, H + 1:H + 2, :] = zrow
    hpad_ref[:, 1:H + 1, :] = h1.reshape(N, H, L).astype(hpad_ref.dtype)

    # ---- conv2 -> BN2 --------------------------------------------------------
    h2 = jnp.dot(shifted_cat(hpad_ref), w2_ref[...],
                 preferred_element_type=f32) + bias_ref[1:2]    # (R, L)
    h2 = batchnorm(h2, gb_ref[2:3], gb_ref[3:4])

    # ---- residual add, lane-dense store --------------------------------------
    o_ref[...] = (h2 + res).reshape(N, H, L).astype(o_ref.dtype)


def _toeplitz(w_hwio, W):
    """(3,3,Ci,Co) HWIO kernel -> list of 3 (W*Ci, W*Co) row-Toeplitz matrices.

    Folds the kx taps and the width zero-padding into constant weight matrices
    so an entire image row becomes one MXU contraction per ky tap.
    """
    KH, KW, Ci, Co = w_hwio.shape
    mats = []
    for ky in range(KH):
        t = jnp.zeros((W * Ci, W * Co), w_hwio.dtype)
        for kx in range(KW):
            band = jnp.eye(W, k=-(kx - 1), dtype=w_hwio.dtype)   # xi == x + kx - 1
            t = t + jnp.kron(band, w_hwio[ky, kx])
        mats.append(t)
    return mats


def _derive_vmem_limit(static_bytes):
    """vmem_limit_bytes from actual footprint + headroom, clamped to HW capacity."""
    try:
        cap = int(getattr(pltpu.get_tpu_info(), "vmem_capacity_bytes", 64 << 20))
    except Exception:  # interpret mode / older runtimes
        cap = 64 << 20
    want = max(8 * static_bytes, 32 << 20)   # headroom for fp32 temporaries
    return int(min(want, (cap * 3) // 4))


def resnet_block(x_nchw, params, *, compute_dtype=jnp.bfloat16):
    """x_nchw: (N, Cin, H, W) fp32.  Returns (N, Cout, H, W) fp32.

    compute_dtype=bf16 (default) feeds the MXU in bf16 with fp32 accumulation
    on every generation (incl. v5e); fp32 mode exists only for numerics checks.
    """
    # NCHW <-> NHWC transposes kept only to match the PyTorch interface.
    # TODO(synk): keep activations NHWC end-to-end in a real pipeline.
    x = jnp.transpose(x_nchw, (0, 2, 3, 1))                     # -> NHWC
    N, H, W, Cin = x.shape
    Cout = params["w1"].shape[-1]
    L = W * Cout                                                # lane-dense width
    assert L % 128 == 0, (
        "W*Cout must be a multiple of 128 for lane-dense stores "
        "(pad Cout in the wrapper for other shapes)")           # TODO(synk): pad L generally
    f32 = jnp.float32

    # Pad Cin so W*Cin_p is a lane (128) multiple -> dense loads, full MXU feed.
    step = 128 // math.gcd(W, 128)
    Cin_p = -(-Cin // step) * step
    w1, wr = params["w1"].astype(f32), params["wr"].astype(f32)
    if Cin_p != Cin:
        w1 = jnp.pad(w1, ((0, 0), (0, 0), (0, Cin_p - Cin), (0, 0)))
        wr = jnp.pad(wr, ((0, Cin_p - Cin), (0, 0)))
        x = jnp.pad(x, ((0, 0), (0, 0), (0, 0), (0, Cin_p - Cin)))

    # Pad H only (W padding is folded into the Toeplitz weights); flatten (W, C).
    xp = jnp.pad(x, ((0, 0), (1, 1), (0, 0), (0, 0)))
    xp = xp.reshape(N, H + 2, W * Cin_p).astype(compute_dtype)

    # --- constant weight matrices (built once, XLA side) ---------------------
    # conv1: 3 ky Toeplitz mats stacked along rows (deep K), residual 1x1
    # block-diag weight appended along output columns on the dy=1 row block.
    T1 = jnp.concatenate(_toeplitz(w1, W), axis=0)              # (3*W*Cin_p, L)
    wr_blk = jnp.kron(jnp.eye(W, dtype=f32), wr)                # (W*Cin_p, L)
    z = jnp.zeros_like(wr_blk)
    Rst = jnp.concatenate([z, wr_blk, z], axis=0)               # (3*W*Cin_p, L)
    w1r = jnp.concatenate([T1, Rst], axis=1).astype(compute_dtype)   # (., 2L)
    # conv2: 3 ky Toeplitz mats stacked along rows.
    w2m = jnp.concatenate(_toeplitz(params["w2"].astype(f32), W),
                          axis=0).astype(compute_dtype)         # (3*L, L)

    # --- packed small parameters ----------------------------------------------
    lane = lambda v: jnp.tile(v.astype(f32), W)                 # (C,) -> (L,)
    bias = jnp.stack([lane(params["b1"]), lane(params["b2"]), lane(params["br"])])
    gb = jnp.stack([params["g1"], params["be1"],
                    params["g2"], params["be2"]]).astype(f32)   # (4, C)
    pool = jnp.tile(jnp.eye(Cout, dtype=f32), (W, 1))           # (L, C)

    operands = (xp, w1r, w2m, bias, gb, pool)
    out_sds = jax.ShapeDtypeStruct((N, H, L), f32)
    cdt_bytes = jnp.dtype(compute_dtype).itemsize
    static_bytes = (sum(math.prod(a.shape) * a.dtype.itemsize for a in operands)
                    + math.prod(out_sds.shape) * 4
                    + N * (H + 2) * L * cdt_bytes)

    vmem = pl.BlockSpec(memory_space=pltpu.MemorySpace.VMEM)
    out = pl.pallas_call(
        _resnet_block_kernel,
        out_shape=out_sds,
        in_specs=[vmem] * len(operands),
        out_specs=vmem,
        scratch_shapes=[pltpu.VMEM((N, H + 2, L), compute_dtype)],
        compiler_params=pltpu.CompilerParams(
            vmem_limit_bytes=_derive_vmem_limit(static_bytes)),
    )(*operands)

    out = out.reshape(N, H, W, Cout)
    return jnp.transpose(out, (0, 3, 1, 2))                     # -> NCHW


# ----------------------------- pure-JAX reference -----------------------------
def _reference(x_nchw, params):
    x = jnp.transpose(x_nchw, (0, 2, 3, 1))                     # NHWC

    def conv3x3(v, w, b):
        y = lax.conv_general_dilated(
            v, w, (1, 1), "SAME",
            dimension_numbers=("NHWC", "HWIO", "NHWC"),
            precision=lax.Precision.HIGHEST)
        return y + b

    def bn(v, g, be):
        m = jnp.mean(v, axis=(0, 1, 2), keepdims=True)
        var = jnp.mean((v - m) ** 2, axis=(0, 1, 2), keepdims=True)
        return (v - m) * lax.rsqrt(var + EPS) * g + be

    h = jnp.maximum(bn(conv3x3(x, params["w1"], params["b1"]),
                       params["g1"], params["be1"]), 0.0)
    h2 = bn(conv3x3(h, params["w2"], params["b2"]),
            params["g2"], params["be2"])
    res = jnp.einsum("nhwc,co->nhwo", x, params["wr"],
                     precision=lax.Precision.HIGHEST) + params["br"]
    return jnp.transpose(h2 + res, (0, 3, 1, 2))                # back to NCHW


if __name__ == "__main__":
    N, Cin, Cout, H, W = 2, 4, 8, 16, 16

    key = jax.random.PRNGKey(0)
    ks = jax.random.split(key, 7)
    params = {
        # conv weights stored in HWIO (equivalent to transposing PyTorch's OIHW)
        "w1": jax.random.normal(ks[0], (3, 3, Cin, Cout), jnp.float32) * 0.1,
        "b1": jax.random.normal(ks[1], (Cout,), jnp.float32) * 0.1,
        "g1": jnp.ones((Cout,), jnp.float32),     # BN default init
        "be1": jnp.zeros((Cout,), jnp.float32),
        "w2": jax.random.normal(ks[2], (3, 3, Cout, Cout), jnp.float32) * 0.1,
        "b2": jax.random.normal(ks[3], (Cout,), jnp.float32) * 0.1,
        "g2": jnp.ones((Cout,), jnp.float32),
        "be2": jnp.zeros((Cout,), jnp.float32),
        "wr": jax.random.normal(ks[4], (Cin, Cout), jnp.float32) * 0.1,
        "br": jax.random.normal(ks[5], (Cout,), jnp.float32) * 0.1,
    }
    x = jax.random.normal(ks[6], (N, Cin, H, W), jnp.float32)

    ref = jax.block_until_ready(_reference(x, params))

    # Default / perf path: bf16 MXU inputs, fp32 accumulation & elementwise.
    out_bf16 = jax.block_until_ready(jax.jit(resnet_block)(x, params))
    assert out_bf16.shape == (N, Cout, H, W), out_bf16.shape
    assert jnp.allclose(out_bf16, ref, atol=1e-1, rtol=1e-1), (
        float(jnp.max(jnp.abs(out_bf16 - ref))))

    # Numerics-validation path (fp32 MXU inputs) — strict check of kernel math.
    out_f32 = jax.block_until_ready(
        jax.jit(partial(resnet_block, compute_dtype=jnp.float32))(x, params))
    assert out_f32.shape == (N, Cout, H, W), out_f32.shape
    assert jnp.allclose(out_f32, ref, atol=2e-3, rtol=2e-3), (
        float(jnp.max(jnp.abs(out_f32 - ref))))

    print("KERNEL_OK")
</pallas_src>

<mosaic_0001>
module attributes {stable_mosaic.version = 11 : i64} {
  func.func @_resnet_block_kernel(%arg0: memref<2x18x128xbf16, #tpu.memory_space<vmem>>, %arg1: memref<384x256xbf16, #tpu.memory_space<vmem>>, %arg2: memref<384x128xbf16, #tpu.memory_space<vmem>>, %arg3: memref<3x128xf32, #tpu.memory_space<vmem>>, %arg4: memref<4x8xf32, #tpu.memory_space<vmem>>, %arg5: memref<128x8xf32, #tpu.memory_space<vmem>>, %arg6: memref<2x16x128xf32, #tpu.memory_space<vmem>>, %arg7: memref<2x18x128xbf16, #tpu.memory_space<vmem>>) attributes {dimension_semantics = [], scalar_prefetch = 0 : i64, scratch_operands = 1 : i64, tpu.core_type = #tpu.core_type<tc>} {
    %c0 = arith.constant 0 : index
    %c0_0 = arith.constant 0 : index
    %c0_1 = arith.constant 0 : index
    %0 = vector.load %arg0[%c0, %c0_0, %c0_1] : memref<2x18x128xbf16, #tpu.memory_space<vmem>>, vector<2x16x128xbf16>
    %1 = vector.shape_cast %0 : vector<2x16x128xbf16> to vector<32x128xbf16>
    %c0_2 = arith.constant 0 : index
    %c1 = arith.constant 1 : index
    %c0_3 = arith.constant 0 : index
    %2 = vector.load %arg0[%c0_2, %c1, %c0_3] : memref<2x18x128xbf16, #tpu.memory_space<vmem>>, vector<2x16x128xbf16>
    %3 = vector.shape_cast %2 : vector<2x16x128xbf16> to vector<32x128xbf16>
    %c0_4 = arith.constant 0 : index
    %c2 = arith.constant 2 : index
    %c0_5 = arith.constant 0 : index
    %4 = vector.load %arg0[%c0_4, %c2, %c0_5] : memref<2x18x128xbf16, #tpu.memory_space<vmem>>, vector<2x16x128xbf16>
    %5 = vector.shape_cast %4 : vector<2x16x128xbf16> to vector<32x128xbf16>
    %6 = tpu.concatenate %1, %3, %5 in 1 : vector<32x128xbf16>, vector<32x128xbf16>, vector<32x128xbf16> -> vector<32x384xbf16>
    %c0_6 = arith.constant 0 : index
    %c0_7 = arith.constant 0 : index
    %7 = vector.load %arg1[%c0_6, %c0_7] : memref<384x256xbf16, #tpu.memory_space<vmem>>, vector<384x256xbf16>
    %cst = arith.constant dense<0.000000e+00> : vector<32x256xf32>
    %8 = tpu.matmul %6, %7, %cst {dimension_numbers = #tpu.dot_dimension_numbers<[1], [0], [0], [1], [0, 0, 1, 1], [], []>} : vector<32x384xbf16>, vector<384x256xbf16>, vector<32x256xf32> -> vector<32x256xf32>
    %9 = vector.extract_strided_slice %8 {offsets = [0, 0], sizes = [32, 128], strides = [1, 1]} : vector<32x256xf32> to vector<32x128xf32>
    %c0_8 = arith.constant 0 : index
    %c0_9 = arith.constant 0 : index
    %10 = vector.load %arg3[%c0_8, %c0_9] : memref<3x128xf32, #tpu.memory_space<vmem>>, vector<1x128xf32>
    %11 = vector.broadcast %10 : vector<1x128xf32> to vector<32x128xf32>
    %12 = arith.addf %9, %11 : vector<32x128xf32>
    %13 = vector.extract_strided_slice %8 {offsets = [0, 128], sizes = [32, 128], strides = [1, 1]} : vector<32x256xf32> to vector<32x128xf32>
    %c2_10 = arith.constant 2 : index
    %c0_11 = arith.constant 0 : index
    %14 = vector.load %arg3[%c2_10, %c0_11] : memref<3x128xf32, #tpu.memory_space<vmem>>, vector<1x128xf32>
    %15 = vector.broadcast %14 : vector<1x128xf32> to vector<32x128xf32>
    %16 = arith.addf %13, %15 : vector<32x128xf32>
    %c0_12 = arith.constant 0 : index
    %c0_13 = arith.constant 0 : index
    %17 = vector.load %arg4[%c0_12, %c0_13] : memref<4x8xf32, #tpu.memory_space<vmem>>, vector<1x8xf32>
    %c1_14 = arith.constant 1 : index
    %c0_15 = arith.constant 0 : index
    %18 = vector.load %arg4[%c1_14, %c0_15] : memref<4x8xf32, #tpu.memory_space<vmem>>, vector<1x8xf32>
    %cst_16 = arith.constant dense<0.000000e+00> : vector<128xf32>
    %19 = vector.multi_reduction <add>, %12, %cst_16 [0] : vector<32x128xf32> to vector<128xf32>
    %20 = vector.shape_cast %19 : vector<128xf32> to vector<1x128xf32>
    %21 = arith.mulf %12, %12 : vector<32x128xf32>
    %cst_17 = arith.constant dense<0.000000e+00> : vector<128xf32>
    %22 = vector.multi_reduction <add>, %21, %cst_17 [0] : vector<32x128xf32> to vector<128xf32>
    %23 = vector.shape_cast %22 : vector<128xf32> to vector<1x128xf32>
    %24 = tpu.concatenate %20, %23 in 0 : vector<1x128xf32>, vector<1x128xf32> -> vector<2x128xf32>
    %c0_18 = arith.constant 0 : index
    %c0_19 = arith.constant 0 : index
    %25 = vector.load %arg5[%c0_18, %c0_19] : memref<128x8xf32, #tpu.memory_space<vmem>>, vector<128x8xf32>
    %cst_20 = arith.constant dense<0.000000e+00> : vector<2x8xf32>
    %26 = tpu.matmul %24, %25, %cst_20 {dimension_numbers = #tpu.dot_dimension_numbers<[1], [0], [0], [1], [0, 0, 1, 1], [], []>} : vector<2x128xf32>, vector<128x8xf32>, vector<2x8xf32> -> vector<2x8xf32>
    %cst_21 = arith.constant 0.001953125 : f32
    %27 = vector.broadcast %cst_21 : f32 to vector<2x8xf32>
    %28 = arith.mulf %26, %27 : vector<2x8xf32>
    %29 = vector.extract_strided_slice %28 {offsets = [0, 0], sizes = [1, 8], strides = [1, 1]} : vector<2x8xf32> to vector<1x8xf32>
    %30 = vector.extract_strided_slice %28 {offsets = [1, 0], sizes = [1, 8], strides = [1, 1]} : vector<2x8xf32> to vector<1x8xf32>
    %31 = arith.mulf %29, %29 : vector<1x8xf32>
    %32 = arith.subf %30, %31 : vector<1x8xf32>
    %cst_22 = arith.constant 9.99999974E-6 : f32
    %33 = vector.broadcast %cst_22 : f32 to vector<1x8xf32>
    %34 = arith.addf %32, %33 : vector<1x8xf32>
    %35 = math.rsqrt %34 : vector<1x8xf32>
    %36 = arith.mulf %17, %35 : vector<1x8xf32>
    %37 = arith.mulf %29, %36 : vector<1x8xf32>
    %38 = arith.subf %18, %37 : vector<1x8xf32>
    %39 = tpu.concatenate %36, %38 in 0 : vector<1x8xf32>, vector<1x8xf32> -> vector<2x8xf32>
    %40 = tpu.concatenate %39, %39, %39, %39, %39, %39, %39, %39, %39, %39, %39, %39, %39, %39, %39, %39 in 1 : vector<2x8xf32>, vector<2x8xf32>, vector<2x8xf32>, vector<2x8xf32>, vector<2x8xf32>, vector<2x8xf32>, vector<2x8xf32>, vector<2x8xf32>, vector<2x8xf32>, vector<2x8xf32>, vector<2x8xf32>, vector<2x8xf32>, vector<2x8xf32>, vector<2x8xf32>, vector<2x8xf32>, vector<2x8xf32> -> vector<2x128xf32>
    %41 = vector.extract_strided_slice %40 {offsets = [0, 0], sizes = [1, 128], strides = [1, 1]} : vector<2x128xf32> to vector<1x128xf32>
    %42 = vector.broadcast %41 : vector<1x128xf32> to vector<32x128xf32>
    %43 = arith.mulf %12, %42 : vector<32x128xf32>
    %44 = vector.extract_strided_slice %40 {offsets = [1, 0], sizes = [1, 128], strides = [1, 1]} : vector<2x128xf32> to vector<1x128xf32>
    %45 = vector.broadcast %44 : vector<1x128xf32> to vector<32x128xf32>
    %46 = arith.addf %43, %45 : vector<32x128xf32>
    %cst_23 = arith.constant 0.000000e+00 : f32
    %47 = vector.broadcast %cst_23 : f32 to vector<32x128xf32>
    %48 = arith.maximumf %46, %47 : vector<32x128xf32>
    %cst_24 = arith.constant 0.000000e+00 : bf16
    %49 = vector.broadcast %cst_24 : bf16 to vector<2x1x128xbf16>
    %c0_25 = arith.constant 0 : index
    %c0_26 = arith.constant 0 : index
    %c0_27 = arith.constant 0 : index
    %50 = vector.load %arg7[%c0_25, %c0_26, %c0_27] : memref<2x18x128xbf16, #tpu.memory_space<vmem>>, vector<2x1x128xbf16>
    tpu.vector_store %arg7[%c0_25, %c0_26, %c0_27], %49 {strides = array<i32>} : memref<2x18x128xbf16, #tpu.memory_space<vmem>>, vector<2x1x128xbf16>,
    %c0_28 = arith.constant 0 : index
    %c17 = arith.constant 17 : index
    %c0_29 = arith.constant 0 : index
    %51 = vector.load %arg7[%c0_28, %c17, %c0_29] : memref<2x18x128xbf16, #tpu.memory_space<vmem>>, vector<2x1x128xbf16>
    tpu.vector_store %arg7[%c0_28, %c17, %c0_29], %49 {strides = array<i32>} : memref<2x18x128xbf16, #tpu.memory_space<vmem>>, vector<2x1x128xbf16>,
    %52 = vector.shape_cast %48 : vector<32x128xf32> to vector<2x16x128xf32>
    %53 = arith.truncf %52 : vector<2x16x128xf32> to vector<2x16x128xbf16>
    %c0_30 = arith.constant 0 : index
    %c1_31 = arith.constant 1 : index
    %c0_32 = arith.constant 0 : index
    %54 = vector.load %arg7[%c0_30, %c1_31, %c0_32] : memref<2x18x128xbf16, #tpu.memory_space<vmem>>, vector<2x16x128xbf16>
    tpu.vector_store %arg7[%c0_30, %c1_31, %c0_32], %53 {strides = array<i32>} : memref<2x18x128xbf16, #tpu.memory_space<vmem>>, vector<2x16x128xbf16>,
    %c0_33 = arith.constant 0 : index
    %c0_34 = arith.constant 0 : index
    %c0_35 = arith.constant 0 : index
    %55 = vector.load %arg7[%c0_33, %c0_34, %c0_35] : memref<2x18x128xbf16, #tpu.memory_space<vmem>>, vector<2x16x128xbf16>
    %56 = vector.shape_cast %55 : vector<2x16x128xbf16> to vector<32x128xbf16>
    %c0_36 = arith.constant 0 : index
    %c1_37 = arith.constant 1 : index
    %c0_38 = arith.constant 0 : index
    %57 = vector.load %arg7[%c0_36, %c1_37, %c0_38] : memref<2x18x128xbf16, #tpu.memory_space<vmem>>, vector<2x16x128xbf16>
    %58 = vector.shape_cast %57 : vector<2x16x128xbf16> to vector<32x128xbf16>
    %c0_39 = arith.constant 0 : index
    %c2_40 = arith.constant 2 : index
    %c0_41 = arith.constant 0 : index
    %59 = vector.load %arg7[%c0_39, %c2_40, %c0_41] : memref<2x18x128xbf16, #tpu.memory_space<vmem>>, vector<2x16x128xbf16>
    %60 = vector.shape_cast %59 : vector<2x16x128xbf16> to vector<32x128xbf16>
    %61 = tpu.concatenate %56, %58, %60 in 1 : vector<32x128xbf16>, vector<32x128xbf16>, vector<32x128xbf16> -> vector<32x384xbf16>
    %c0_42 = arith.constant 0 : index
    %c0_43 = arith.constant 0 : index
    %62 = vector.load %arg2[%c0_42, %c0_43] : memref<384x128xbf16, #tpu.memory_space<vmem>>, vector<384x128xbf16>
    %cst_44 = arith.constant dense<0.000000e+00> : vector<32x128xf32>
    %63 = tpu.matmul %61, %62, %cst_44 {dimension_numbers = #tpu.dot_dimension_numbers<[1], [0], [0], [1], [0, 0, 1, 1], [], []>} : vector<32x384xbf16>, vector<384x128xbf16>, vector<32x128xf32> -> vector<32x128xf32>
    %c1_45 = arith.constant 1 : index
    %c0_46 = arith.constant 0 : index
    %64 = vector.load %arg3[%c1_45, %c0_46] : memref<3x128xf32, #tpu.memory_space<vmem>>, vector<1x128xf32>
    %65 = vector.broadcast %64 : vector<1x128xf32> to vector<32x128xf32>
    %66 = arith.addf %63, %65 : vector<32x128xf32>
    %c2_47 = arith.constant 2 : index
    %c0_48 = arith.constant 0 : index
    %67 = vector.load %arg4[%c2_47, %c0_48] : memref<4x8xf32, #tpu.memory_space<vmem>>, vector<1x8xf32>
    %c3 = arith.constant 3 : index
    %c0_49 = arith.constant 0 : index
    %68 = vector.load %arg4[%c3, %c0_49] : memref<4x8xf32, #tpu.memory_space<vmem>>, vector<1x8xf32>
    %cst_50 = arith.constant dense<0.000000e+00> : vector<128xf32>
    %69 = vector.multi_reduction <add>, %66, %cst_50 [0] : vector<32x128xf32> to vector<128xf32>
    %70 = vector.shape_cast %69 : vector<128xf32> to vector<1x128xf32>
    %71 = arith.mulf %66, %66 : vector<32x128xf32>
    %cst_51 = arith.constant dense<0.000000e+00> : vector<128xf32>
    %72 = vector.multi_reduction <add>, %71, %cst_51 [0] : vector<32x128xf32> to vector<128xf32>
    %73 = vector.shape_cast %72 : vector<128xf32> to vector<1x128xf32>
    %74 = tpu.concatenate %70, %73 in 0 : vector<1x128xf32>, vector<1x128xf32> -> vector<2x128xf32>
    %c0_52 = arith.constant 0 : index
    %c0_53 = arith.constant 0 : index
    %75 = vector.load %arg5[%c0_52, %c0_53] : memref<128x8xf32, #tpu.memory_space<vmem>>, vector<128x8xf32>
    %cst_54 = arith.constant dense<0.000000e+00> : vector<2x8xf32>
    %76 = tpu.matmul %74, %75, %cst_54 {dimension_numbers = #tpu.dot_dimension_numbers<[1], [0], [0], [1], [0, 0, 1, 1], [], []>} : vector<2x128xf32>, vector<128x8xf32>, vector<2x8xf32> -> vector<2x8xf32>
    %cst_55 = arith.constant 0.001953125 : f32
    %77 = vector.broadcast %cst_55 : f32 to vector<2x8xf32>
    %78 = arith.mulf %76, %77 : vector<2x8xf32>
    %79 = vector.extract_strided_slice %78 {offsets = [0, 0], sizes = [1, 8], strides = [1, 1]} : vector<2x8xf32> to vector<1x8xf32>
    %80 = vector.extract_strided_slice %78 {offsets = [1, 0], sizes = [1, 8], strides = [1, 1]} : vector<2x8xf32> to vector<1x8xf32>
    %81 = arith.mulf %79, %79 : vector<1x8xf32>
    %82 = arith.subf %80, %81 : vector<1x8xf32>
    %cst_56 = arith.constant 9.99999974E-6 : f32
    %83 = vector.broadcast %cst_56 : f32 to vector<1x8xf32>
    %84 = arith.addf %82, %83 : vector<1x8xf32>
    %85 = math.rsqrt %84 : vector<1x8xf32>
    %86 = arith.mulf %67, %85 : vector<1x8xf32>
    %87 = arith.mulf %79, %86 : vector<1x8xf32>
    %88 = arith.subf %68, %87 : vector<1x8xf32>
    %89 = tpu.concatenate %86, %88 in 0 : vector<1x8xf32>, vector<1x8xf32> -> vector<2x8xf32>
    %90 = tpu.concatenate %89, %89, %89, %89, %89, %89, %89, %89, %89, %89, %89, %89, %89, %89, %89, %89 in 1 : vector<2x8xf32>, vector<2x8xf32>, vector<2x8xf32>, vector<2x8xf32>, vector<2x8xf32>, vector<2x8xf32>, vector<2x8xf32>, vector<2x8xf32>, vector<2x8xf32>, vector<2x8xf32>, vector<2x8xf32>, vector<2x8xf32>, vector<2x8xf32>, vector<2x8xf32>, vector<2x8xf32>, vector<2x8xf32> -> vector<2x128xf32>
    %91 = vector.extract_strided_slice %90 {offsets = [0, 0], sizes = [1, 128], strides = [1, 1]} : vector<2x128xf32> to vector<1x128xf32>
    %92 = vector.broadcast %91 : vector<1x128xf32> to vector<32x128xf32>
    %93 = arith.mulf %66, %92 : vector<32x128xf32>
    %94 = vector.extract_strided_slice %90 {offsets = [1, 0], sizes = [1, 128], strides = [1, 1]} : vector<2x128xf32> to vector<1x128xf32>
    %95 = vector.broadcast %94 : vector<1x128xf32> to vector<32x128xf32>
    %96 = arith.addf %93, %95 : vector<32x128xf32>
    %97 = arith.addf %96, %16 : vector<32x128xf32>
    %98 = vector.shape_cast %97 : vector<32x128xf32> to vector<2x16x128xf32>
    %c0_57 = arith.constant 0 : index
    %c0_58 = arith.constant 0 : index
    %c0_59 = arith.constant 0 : index
    %99 = vector.load %arg6[%c0_57, %c0_58, %c0_59] : memref<2x16x128xf32, #tpu.memory_space<vmem>>, vector<2x16x128xf32>
    tpu.vector_store %arg6[%c0_57, %c0_58, %c0_59], %98 {strides = array<i32>} : memref<2x16x128xf32, #tpu.memory_space<vmem>>, vector<2x16x128xf32>,
    return
  }
}

</mosaic_0001>

<llo_original>
// kernel: tile.23
$region0: #{tile.23}
  #allocation0 [shape = 's32[1]{0}', space=sflag, size = 0x4, scoped, tag = 'scoped memory for tile.23']
  %s0 = inlined_call_operand.vmem [shape: f32[8], index: 0, kind: input, shape index: {}]
  %s1 = inlined_call_operand.vmem [shape: f32[16,8], index: 1, kind: output, shape index: {}]
  // Predicated region
  $region2: #{tile.23} parent=0 // pred_check
    _
  $region3: #{tile.23} parent=0 // pred_check_branch
    %3 = sbr.rel (0) target = $region5
  $region4: #{tile.23} parent=0 // pred_region
    _
  $region5: #{tile.23} parent=0 // pred_fallthru
    _
  %v4 = vld [vmem:[%s0] ss:$0 sm:$0xff]
  %5 = vst [vmem:[%s1] sm:$0xff] %v4
  %s6 = scalar_lea.vmem %s1, 8
  %7 = vst [vmem:[%s6] sm:$0xff] %v4

// kernel: tile.32
$region0: #{tile.32}
  %s0 = inlined_call_operand.vmem [shape: f32[16,8], index: 0, kind: input, shape index: {}]
  %s1 = inlined_call_operand.vmem [shape: f32[1,128], index: 1, kind: output, shape index: {}]
  $region1: #{tile.32} parent=0
    #allocation0 [shape = 'u8[4096]{0}', space=vmem, size = 0x1000, scoped, tag = 'scoped mem for output reshape']
    %v2 = vld [vmem:[%s0] sm:$0x1]
    %vm3 = vcmask 64512
    %4 = vst.msk [vmem:[#allocation0] sm:$0x1] %vm3, %v2
    %s5 = scalar_lea.vmem %s0, 15
    %v6 = vld [vmem:[%s5] sm:$0x1]
    %7 = vrot.lane.b32.xlu0 %v6, 120
    %v8 = vpop.permute.xlu0 %7
    %vm9 = vcmask 1048512
    %10 = vst.msk [vmem:[#allocation0] sm:$0x1] %vm9, %v8
    %s11 = scalar_lea.vmem %s0, 14
    %v12 = vld [vmem:[%s11] sm:$0x1]
    %13 = vrot.lane.b32.xlu0 %v12, 112
    %v14 = vpop.permute.xlu0 %13
    %vm15 = vcmask 982912
    %16 = vst.msk [vmem:[#allocation0] sm:$0x1] %vm15, %v14
    %s17 = scalar_lea.vmem %s0, 13
    %v18 = vld [vmem:[%s17] sm:$0x1]
    %19 = vrot.lane.b32.xlu0 %v18, 104
    %v20 = vpop.permute.xlu0 %19
    %vm21 = vcmask 917312
    %22 = vst.msk [vmem:[#allocation0] sm:$0x1] %vm21, %v20
    %s23 = scalar_lea.vmem %s0, 12
    %v24 = vld [vmem:[%s23] sm:$0x1]
    %25 = vrot.lane.b32.xlu0 %v24, 96
    %v26 = vpop.permute.xlu0 %25
    %vm27 = vcmask 851712
    %28 = vst.msk [vmem:[#allocation0] sm:$0x1] %vm27, %v26
    %s29 = scalar_lea.vmem %s0, 11
    %v30 = vld [vmem:[%s29] sm:$0x1]
    %31 = vrot.lane.b32.xlu0 %v30, 88
    %v32 = vpop.permute.xlu0 %31
    %vm33 = vcmask 786112
    %34 = vst.msk [vmem:[#allocation0] sm:$0x1] %vm33, %v32
    %s35 = scalar_lea.vmem %s0, 10
    %v36 = vld [vmem:[%s35] sm:$0x1]
    %37 = vrot.lane.b32.xlu0 %v36, 80
    %v38 = vpop.permute.xlu0 %37
    %vm39 = vcmask 720512
    %40 = vst.msk [vmem:[#allocation0] sm:$0x1] %vm39, %v38
    %s41 = scalar_lea.vmem %s0, 9
    %v42 = vld [vmem:[%s41] sm:$0x1]
    %43 = vrot.lane.b32.xlu0 %v42, 72
    %v44 = vpop.permute.xlu0 %43
    %vm45 = vcmask 654912
    %46 = vst.msk [vmem:[#allocation0] sm:$0x1] %vm45, %v44
    %s47 = scalar_lea.vmem %s0, 8
    %v48 = vld [vmem:[%s47] sm:$0x1]
    %49 = vrot.lane.b32.xlu0 %v48, 64
    %v50 = vpop.permute.xlu0 %49
    %vm51 = vcmask 589312
    %52 = vst.msk [vmem:[#allocation0] sm:$0x1] %vm51, %v50
    %s53 = scalar_lea.vmem %s0, 7
    %v54 = vld [vmem:[%s53] sm:$0x1]
    %55 = vrot.lane.b32.xlu0 %v54, 56
    %v56 = vpop.permute.xlu0 %55
    %vm57 = vcmask 523712
    %58 = vst.msk [vmem:[#allocation0] sm:$0x1] %vm57, %v56
    %s59 = scalar_lea.vmem %s0, 6
    %v60 = vld [vmem:[%s59] sm:$0x1]
    %61 = vrot.lane.b32.xlu0 %v60, 48
    %v62 = vpop.permute.xlu0 %61
    %vm63 = vcmask 458112
    %64 = vst.msk [vmem:[#allocation0] sm:$0x1] %vm63, %v62
    %s65 = scalar_lea.vmem %s0, 5
    %v66 = vld [vmem:[%s65] sm:$0x1]
    %67 = vrot.lane.b32.xlu0 %v66, 40
    %v68 = vpop.permute.xlu0 %67
    %vm69 = vcmask 392512
    %70 = vst.msk [vmem:[#allocation0] sm:$0x1] %vm69, %v68
    %s71 = scalar_lea.vmem %s0, 4
    %v72 = vld [vmem:[%s71] sm:$0x1]
    %73 = vrot.lane.b32.xlu0 %v72, 32
    %v74 = vpop.permute.xlu0 %73
    %vm75 = vcmask 326912
    %76 = vst.msk [vmem:[#allocation0] sm:$0x1] %vm75, %v74
    %s77 = scalar_lea.vmem %s0, 3
    %v78 = vld [vmem:[%s77] sm:$0x1]
    %79 = vrot.lane.b32.xlu0 %v78, 24
    %v80 = vpop.permute.xlu0 %79
    %vm81 = vcmask 261312
    %82 = vst.msk [vmem:[#allocation0] sm:$0x1] %vm81, %v80
    %s83 = scalar_lea.vmem %s0, 2
    %v84 = vld [vmem:[%s83] sm:$0x1]
    %85 = vrot.lane.b32.xlu0 %v84, 16
    %v86 = vpop.permute.xlu0 %85
    %vm87 = vcmask 195712
    %88 = vst.msk [vmem:[#allocation0] sm:$0x1] %vm87, %v86
    %s89 = scalar_lea.vmem %s0, 1
    %v90 = vld [vmem:[%s89] sm:$0x1]
    %91 = vrot.lane.b32.xlu0 %v90, 8
    %v92 = vpop.permute.xlu0 %91
    %vm93 = vcmask 130112
    %94 = vst.msk [vmem:[#allocation0] sm:$0x1] %vm93, %v92
    %s96 = sshllo.u32 0, 1
    %v98 = vld [vmem:[#allocation0] sm:%s96]
    %s99 = sshllo.u32 0, 1
    %100 = vst [vmem:[%s1] sm:%s99] %v98

// kernel: resnet_block.1
$region0: #{resnet_block.1}
  #allocation0 [shape = 'u32[]', space=smem, size = 0x4, offset = 0x4, fixed_abs, tag = 'smem constant byte address 0x4 - core index']
  #allocation1 [shape = 'u32[144,128]{1,0:T(1,128)}', space=vmem, size = 0x12000, scoped, tag = 'internal scratch']
  #allocation2 [shape = 'bf16[2,18,128]{2,1,0:T(8,128)(2,1)}', space=vmem, size = 0x3000, scoped, tag = 'scratch operand']
  %s0 = inlined_call_operand.vmem [shape: bf16[2,18,128], index: 0, kind: input, shape index: {}]
  %s1 = inlined_call_operand.vmem [shape: bf16[384,256], index: 1, kind: input, shape index: {}]
  %s2 = inlined_call_operand.vmem [shape: bf16[384,128], index: 2, kind: input, shape index: {}]
  %s3 = inlined_call_operand.vmem [shape: f32[3,128], index: 3, kind: input, shape index: {}]
  %s4 = inlined_call_operand.vmem [shape: f32[4,8], index: 4, kind: input, shape index: {}]
  %s5 = inlined_call_operand.vmem [shape: f32[128,8], index: 5, kind: input, shape index: {}]
  %s6 = inlined_call_operand.vmem [shape: f32[2,16,128], index: 6, kind: output, shape index: {}]
  %s7 = sld [smem:[#allocation0]]
  $region34: #{resnet_block.1} parent=0
    _
  %s9 = ssub.s32 1, %s7
  %s10 = scalar_select 0, %s9, %s7
  // Predicated region
  $region2: #{resnet_block.1} parent=0 // pred_check
    _
  $region3: #{resnet_block.1} parent=0 // pred_check_branch
    %12 = sbr.rel (0) target = $region5
  $region4: #{resnet_block.1} parent=0 // pred_region
    _
  $region5: #{resnet_block.1} parent=0 // pred_fallthru
    _
  // Predicated region
  $region6: #{resnet_block.1} parent=0 // pred_check
    _
  $region7: #{resnet_block.1} parent=0 // pred_check_branch
    %14 = sbr.rel (0) target = $region9
  $region8: #{resnet_block.1} parent=0 // pred_region
    _
  $region9: #{resnet_block.1} parent=0 // pred_fallthru
    _
  // Predicated region
  $region10: #{resnet_block.1} parent=0 // pred_check
    _
  $region11: #{resnet_block.1} parent=0 // pred_check_branch
    %16 = sbr.rel (0) target = $region13
  $region12: #{resnet_block.1} parent=0 // pred_region
    _
  $region13: #{resnet_block.1} parent=0 // pred_fallthru
    _
  // Predicated region
  $region14: #{resnet_block.1} parent=0 // pred_check
    _
  $region15: #{resnet_block.1} parent=0 // pred_check_branch
    %18 = sbr.rel (0) target = $region17
  $region16: #{resnet_block.1} parent=0 // pred_region
    _
  $region17: #{resnet_block.1} parent=0 // pred_fallthru
    _
  // Predicated region
  $region18: #{resnet_block.1} parent=0 // pred_check
    _
  $region19: #{resnet_block.1} parent=0 // pred_check_branch
    %20 = sbr.rel (0) target = $region21
  $region20: #{resnet_block.1} parent=0 // pred_region
    _
  $region21: #{resnet_block.1} parent=0 // pred_fallthru
    _
  // Predicated region
  $region22: #{resnet_block.1} parent=0 // pred_check
    _
  $region23: #{resnet_block.1} parent=0 // pred_check_branch
    %22 = sbr.rel (0) target = $region25
  $region24: #{resnet_block.1} parent=0 // pred_region
    _
  $region25: #{resnet_block.1} parent=0 // pred_fallthru
    _
  %v24 = vld [vmem:[%s0] sm:$0xf]
  %v25 = vld [vmem:[%s0 + $0x4] sm:$0xf]
  %v26 = vld [vmem:[%s0 + $0xc] sm:$0xf]
  %v27 = vld [vmem:[%s0 + $0x10] sm:$0xf]
  %v28 = vld [vmem:[%s0 + $0x8] sm:$0x1]
  %v29 = vld [vmem:[%s0 + $0x14] sm:$0x1]
  %vm30 = vsmask.f32 3328
  %vm31 = vsmask.f32 7440
  %vm32 = vmor %vm30, %vm31
  %v34 = vshrl.u32 %v24, 16
  %v36 = vrot.slane %v34, 4
  %v37 = vshll.u32 %v24, 16
  %v39 = vrot.slane %v37, 5
  %v40 = vor.u32 %v36, %v39
  %v41 = vrot.slane %v40, 4
  %v43 = vshll.u32 %v25, 16
  %v45 = vrot.slane %v43, 5
  %v46 = vsel %vm32, %v41, %v45
  %v47 = vshrl.u32 %v25, 16
  %v49 = vrot.slane %v47, 4
  %v50 = vor.u32 %v49, %v45
  %v51 = vrot.slane %v50, 4
  %v53 = vshll.u32 %v28, 16
  %v55 = vrot.slane %v53, 5
  %v56 = vsel %vm32, %v51, %v55
  %v58 = vshrl.u32 %v26, 16
  %v60 = vrot.slane %v58, 4
  %v61 = vshll.u32 %v26, 16
  %v63 = vrot.slane %v61, 5
  %v64 = vor.u32 %v60, %v63
  %v65 = vrot.slane %v64, 4
  %v67 = vshll.u32 %v27, 16
  %v69 = vrot.slane %v67, 5
  %v70 = vsel %vm32, %v65, %v69
  %v71 = vshrl.u32 %v27, 16
  %v73 = vrot.slane %v71, 4
  %v74 = vor.u32 %v73, %v69
  %v75 = vrot.slane %v74, 4
  %v77 = vshll.u32 %v29, 16
  %v79 = vrot.slane %v77, 5
  %v80 = vsel %vm32, %v75, %v79
  %v81 = vld [vmem:[%s0] sm:$0xe]
  %v82 = vld [vmem:[%s0 + $0xc] sm:$0xe]
  %vm89 = vcmask 1042432
  %vm90 = vcmask 1046532
  %vm91 = vmor %vm89, %vm90
  %v92 = vrot.slane %v81, 5
  %v93 = vrot.slane %v92, 4
  %v94 = vrot.slane %v25, 5
  %v95 = vsel %vm91, %v93, %v94
  %v96 = vrot.slane %v94, 4
  %v97 = vrot.slane %v28, 5
  %v98 = vsel %vm91, %v96, %v97
  %v99 = vrot.slane %v82, 5
  %v100 = vrot.slane %v99, 4
  %v101 = vrot.slane %v27, 5
  %v102 = vsel %vm91, %v100, %v101
  %v103 = vrot.slane %v101, 4
  %v104 = vrot.slane %v29, 5
  %v105 = vsel %vm91, %v103, %v104
  %v108 = vunpack.c.l.b16 %v24
  %v109 = vunpack.c.l.b16 %v25
  %v110 = vunpack.c.l.b16 %v26
  %v111 = vunpack.c.l.b16 %v27
  %v112 = vpack.c.b16 %v109, %v108
  %v113 = vpack.c.b16 %v111, %v110
  %v116 = vunpack.c.l.b16 %v46
  %v117 = vunpack.c.l.b16 %v56
  %v118 = vunpack.c.l.b16 %v70
  %v119 = vunpack.c.l.b16 %v80
  %v120 = vpack.c.b16 %v117, %v116
  %v121 = vpack.c.b16 %v119, %v118
  %v124 = vunpack.c.l.b16 %v95
  %v125 = vunpack.c.l.b16 %v98
  %v126 = vunpack.c.l.b16 %v102
  %v127 = vunpack.c.l.b16 %v105
  %v128 = vpack.c.b16 %v125, %v124
  %v129 = vpack.c.b16 %v127, %v126
  %v132 = vld [vmem:[%s1] sm:$0xff]
  %v133 = vld [vmem:[%s1 + $0x8] sm:$0xff]
  %v134 = vld [vmem:[%s1 + $0x10] sm:$0xff]
  %v135 = vld [vmem:[%s1 + $0x18] sm:$0xff]
  %v136 = vld [vmem:[%s1 + $0x20] sm:$0xff]
  %v137 = vld [vmem:[%s1 + $0x28] sm:$0xff]
  %v138 = vld [vmem:[%s1 + $0x30] sm:$0xff]
  %v139 = vld [vmem:[%s1 + $0x38] sm:$0xff]
  %v140 = vld [vmem:[%s1 + $0x40] sm:$0xff]
  %v141 = vld [vmem:[%s1 + $0x48] sm:$0xff]
  %v142 = vld [vmem:[%s1 + $0x50] sm:$0xff]
  %v143 = vld [vmem:[%s1 + $0x58] sm:$0xff]
  %v144 = vld [vmem:[%s1 + $0x60] sm:$0xff]
  %v145 = vld [vmem:[%s1 + $0x68] sm:$0xff]
  %v146 = vld [vmem:[%s1 + $0x70] sm:$0xff]
  %v147 = vld [vmem:[%s1 + $0x78] sm:$0xff]
  %v148 = vld [vmem:[%s1 + $0x80] sm:$0xff]
  %v149 = vld [vmem:[%s1 + $0x88] sm:$0xff]
  %v150 = vld [vmem:[%s1 + $0x90] sm:$0xff]
  %v151 = vld [vmem:[%s1 + $0x98] sm:$0xff]
  %v152 = vld [vmem:[%s1 + $0xa0] sm:$0xff]
  %v153 = vld [vmem:[%s1 + $0xa8] sm:$0xff]
  %v154 = vld [vmem:[%s1 + $0xb0] sm:$0xff]
  %v155 = vld [vmem:[%s1 + $0xb8] sm:$0xff]
  %v156 = vld [vmem:[%s1 + $0xc0] sm:$0xff]
  %v157 = vld [vmem:[%s1 + $0xc8] sm:$0xff]
  %v158 = vld [vmem:[%s1 + $0xd0] sm:$0xff]
  %v159 = vld [vmem:[%s1 + $0xd8] sm:$0xff]
  %v160 = vld [vmem:[%s1 + $0xe0] sm:$0xff]
  %v161 = vld [vmem:[%s1 + $0xe8] sm:$0xff]
  %v162 = vld [vmem:[%s1 + $0xf0] sm:$0xff]
  %v163 = vld [vmem:[%s1 + $0xf8] sm:$0xff]
  %v164 = vld [vmem:[%s1 + $0x100] sm:$0xff]
  %v165 = vld [vmem:[%s1 + $0x108] sm:$0xff]
  %v166 = vld [vmem:[%s1 + $0x110] sm:$0xff]
  %v167 = vld [vmem:[%s1 + $0x118] sm:$0xff]
  %v168 = vld [vmem:[%s1 + $0x120] sm:$0xff]
  %v169 = vld [vmem:[%s1 + $0x128] sm:$0xff]
  %v170 = vld [vmem:[%s1 + $0x130] sm:$0xff]
  %v171 = vld [vmem:[%s1 + $0x138] sm:$0xff]
  %v172 = vld [vmem:[%s1 + $0x140] sm:$0xff]
  %v173 = vld [vmem:[%s1 + $0x148] sm:$0xff]
  %v174 = vld [vmem:[%s1 + $0x150] sm:$0xff]
  %v175 = vld [vmem:[%s1 + $0x158] sm:$0xff]
  %v176 = vld [vmem:[%s1 + $0x160] sm:$0xff]
  %v177 = vld [vmem:[%s1 + $0x168] sm:$0xff]
  %v178 = vld [vmem:[%s1 + $0x170] sm:$0xff]
  %v179 = vld [vmem:[%s1 + $0x178] sm:$0xff]
  %v228 = vunpack.c.l.b16 %v132
  %v229 = vunpack.c.h.b16 %v132
  %v230 = vunpack.c.l.b16 %v133
  %v231 = vunpack.c.h.b16 %v133
  %v232 = vunpack.c.l.b16 %v134
  %v233 = vunpack.c.h.b16 %v134
  %v234 = vunpack.c.l.b16 %v135
  %v235 = vunpack.c.h.b16 %v135
  %v236 = vunpack.c.l.b16 %v136
  %v237 = vunpack.c.h.b16 %v136
  %v238 = vunpack.c.l.b16 %v137
  %v239 = vunpack.c.h.b16 %v137
  %v240 = vunpack.c.l.b16 %v138
  %v241 = vunpack.c.h.b16 %v138
  %v242 = vunpack.c.l.b16 %v139
  %v243 = vunpack.c.h.b16 %v139
  %v244 = vunpack.c.l.b16 %v140
  %v245 = vunpack.c.h.b16 %v140
  %v246 = vunpack.c.l.b16 %v141
  %v247 = vunpack.c.h.b16 %v141
  %v248 = vunpack.c.l.b16 %v142
  %v249 = vunpack.c.h.b16 %v142
  %v250 = vunpack.c.l.b16 %v143
  %v251 = vunpack.c.h.b16 %v143
  %v252 = vunpack.c.l.b16 %v144
  %v253 = vunpack.c.h.b16 %v144
  %v254 = vunpack.c.l.b16 %v145
  %v255 = vunpack.c.h.b16 %v145
  %v256 = vunpack.c.l.b16 %v146
  %v257 = vunpack.c.h.b16 %v146
  %v258 = vunpack.c.l.b16 %v147
  %v259 = vunpack.c.h.b16 %v147
  %v260 = vunpack.c.l.b16 %v148
  %v261 = vunpack.c.h.b16 %v148
  %v262 = vunpack.c.l.b16 %v149
  %v263 = vunpack.c.h.b16 %v149
  %v264 = vunpack.c.l.b16 %v150
  %v265 = vunpack.c.h.b16 %v150
  %v266 = vunpack.c.l.b16 %v151
  %v267 = vunpack.c.h.b16 %v151
  %v268 = vunpack.c.l.b16 %v152
  %v269 = vunpack.c.h.b16 %v152
  %v270 = vunpack.c.l.b16 %v153
  %v271 = vunpack.c.h.b16 %v153
  %v272 = vunpack.c.l.b16 %v154
  %v273 = vunpack.c.h.b16 %v154
  %v274 = vunpack.c.l.b16 %v155
  %v275 = vunpack.c.h.b16 %v155
  %v276 = vunpack.c.l.b16 %v156
  %v277 = vunpack.c.h.b16 %v156
  %v278 = vunpack.c.l.b16 %v157
  %v279 = vunpack.c.h.b16 %v157
  %v280 = vunpack.c.l.b16 %v158
  %v281 = vunpack.c.h.b16 %v158
  %v282 = vunpack.c.l.b16 %v159
  %v283 = vunpack.c.h.b16 %v159
  %v284 = vunpack.c.l.b16 %v160
  %v285 = vunpack.c.h.b16 %v160
  %v286 = vunpack.c.l.b16 %v161
  %v287 = vunpack.c.h.b16 %v161
  %v288 = vunpack.c.l.b16 %v162
  %v289 = vunpack.c.h.b16 %v162
  %v290 = vunpack.c.l.b16 %v163
  %v291 = vunpack.c.h.b16 %v163
  %v292 = vunpack.c.l.b16 %v164
  %v293 = vunpack.c.h.b16 %v164
  %v294 = vunpack.c.l.b16 %v165
  %v295 = vunpack.c.h.b16 %v165
  %v296 = vunpack.c.l.b16 %v166
  %v297 = vunpack.c.h.b16 %v166
  %v298 = vunpack.c.l.b16 %v167
  %v299 = vunpack.c.h.b16 %v167
  %v300 = vunpack.c.l.b16 %v168
  %v301 = vunpack.c.h.b16 %v168
  %v302 = vunpack.c.l.b16 %v169
  %v303 = vunpack.c.h.b16 %v169
  %v304 = vunpack.c.l.b16 %v170
  %v305 = vunpack.c.h.b16 %v170
  %v306 = vunpack.c.l.b16 %v171
  %v307 = vunpack.c.h.b16 %v171
  %v308 = vunpack.c.l.b16 %v172
  %v309 = vunpack.c.h.b16 %v172
  %v310 = vunpack.c.l.b16 %v173
  %v311 = vunpack.c.h.b16 %v173
  %v312 = vunpack.c.l.b16 %v174
  %v313 = vunpack.c.h.b16 %v174
  %v314 = vunpack.c.l.b16 %v175
  %v315 = vunpack.c.h.b16 %v175
  %v316 = vunpack.c.l.b16 %v176
  %v317 = vunpack.c.h.b16 %v176
  %v318 = vunpack.c.l.b16 %v177
  %v319 = vunpack.c.h.b16 %v177
  %v320 = vunpack.c.l.b16 %v178
  %v321 = vunpack.c.h.b16 %v178
  %v322 = vunpack.c.l.b16 %v179
  %v323 = vunpack.c.h.b16 %v179
  %v324 = vpack.c.b16 %v230, %v228
  %v325 = vpack.c.b16 %v231, %v229
  %v326 = vpack.c.b16 %v234, %v232
  %v327 = vpack.c.b16 %v235, %v233
  %v328 = vpack.c.b16 %v238, %v236
  %v329 = vpack.c.b16 %v239, %v237
  %v330 = vpack.c.b16 %v242, %v240
  %v331 = vpack.c.b16 %v243, %v241
  %v332 = vpack.c.b16 %v246, %v244
  %v333 = vpack.c.b16 %v247, %v245
  %v334 = vpack.c.b16 %v250, %v248
  %v335 = vpack.c.b16 %v251, %v249
  %v336 = vpack.c.b16 %v254, %v252
  %v337 = vpack.c.b16 %v255, %v253
  %v338 = vpack.c.b16 %v258, %v256
  %v339 = vpack.c.b16 %v259, %v257
  %v340 = vpack.c.b16 %v262, %v260
  %v341 = vpack.c.b16 %v263, %v261
  %v342 = vpack.c.b16 %v266, %v264
  %v343 = vpack.c.b16 %v267, %v265
  %v344 = vpack.c.b16 %v270, %v268
  %v345 = vpack.c.b16 %v271, %v269
  %v346 = vpack.c.b16 %v274, %v272
  %v347 = vpack.c.b16 %v275, %v273
  %v348 = vpack.c.b16 %v278, %v276
  %v349 = vpack.c.b16 %v279, %v277
  %v350 = vpack.c.b16 %v282, %v280
  %v351 = vpack.c.b16 %v283, %v281
  %v352 = vpack.c.b16 %v286, %v284
  %v353 = vpack.c.b16 %v287, %v285
  %v354 = vpack.c.b16 %v290, %v288
  %v355 = vpack.c.b16 %v291, %v289
  %v356 = vpack.c.b16 %v294, %v292
  %v357 = vpack.c.b16 %v295, %v293
  %v358 = vpack.c.b16 %v298, %v296
  %v359 = vpack.c.b16 %v299, %v297
  %v360 = vpack.c.b16 %v302, %v300
  %v361 = vpack.c.b16 %v303, %v301
  %v362 = vpack.c.b16 %v306, %v304
  %v363 = vpack.c.b16 %v307, %v305
  %v364 = vpack.c.b16 %v310, %v308
  %v365 = vpack.c.b16 %v311, %v309
  %v366 = vpack.c.b16 %v314, %v312
  %v367 = vpack.c.b16 %v315, %v313
  %v368 = vpack.c.b16 %v318, %v316
  %v369 = vpack.c.b16 %v319, %v317
  %v370 = vpack.c.b16 %v322, %v320
  %v371 = vpack.c.b16 %v323, %v321
  %420 = vmatprep.subr.bf16.mxu0 %v325
  %421 = vmatpush1.bf16.msra.mxu0 %v324
  %422 = vmatprep.subr.bf16.mxu0 %v327
  %423 = vmatpush1.bf16.msra.mxu0 %v326
  %424 = vmatprep.subr.bf16.mxu0 %v329
  %425 = vmatpush1.bf16.msra.mxu0 %v328
  %426 = vmatprep.subr.bf16.mxu0 %v331
  %427 = vmatpush1.bf16.msra.mxu0 %v330
  %428 = vmatprep.subr.bf16.mxu0 %v333
  %429 = vmatpush1.bf16.msra.mxu0 %v332
  %430 = vmatprep.subr.bf16.mxu0 %v335
  %431 = vmatpush1.bf16.msra.mxu0 %v334
  %432 = vmatprep.subr.bf16.mxu0 %v337
  %433 = vmatpush1.bf16.msra.mxu0 %v336
  %434 = vmatprep.subr.bf16.mxu0 %v339
  %435 = vmatpush1.bf16.msra.mxu0 %v338
  %436 = vmatprep.subr.bf16.mxu0 %v341
  %437 = vmatpush1.bf16.msra.mxu0 %v340
  %438 = vmatprep.subr.bf16.mxu0 %v343
  %439 = vmatpush1.bf16.msra.mxu0 %v342
  %440 = vmatprep.subr.bf16.mxu0 %v345
  %441 = vmatpush1.bf16.msra.mxu0 %v344
  %442 = vmatprep.subr.bf16.mxu0 %v347
  %443 = vmatpush1.bf16.msra.mxu0 %v346
  %444 = vmatprep.subr.bf16.mxu0 %v349
  %445 = vmatpush1.bf16.msra.mxu0 %v348
  %446 = vmatprep.subr.bf16.mxu0 %v351
  %447 = vmatpush1.bf16.msra.mxu0 %v350
  %448 = vmatprep.subr.bf16.mxu0 %v353
  %449 = vmatpush1.bf16.msra.mxu0 %v352
  %450 = vmatprep.subr.bf16.mxu0 %v355
  %451 = vmatpush1.bf16.msra.mxu0 %v354
  %452 = vmatprep.mubr.bf16.mxu0 %v120
  %453 = vmatmul.mubr.bf16.gmra.mrb[0].mxu0 %v112
  %v454 = vpop.f32.mrb[0].mxu0
  %v455 = vadd.f32 0.0, %v454
  %v456 = vpop.f32.mrb[0].mxu0
  %v457 = vadd.f32 0.0, %v456
  %v458 = vpop.f32.mrb[0].mxu0
  %v459 = vadd.f32 0.0, %v458
  %v460 = vpop.f32.mrb[0].mxu0
  %v461 = vadd.f32 0.0, %v460
  %462 = vmatprep.mubr.bf16.mxu0 %v121
  %463 = vmatmul.mubr.bf16.gmra.mrb[0].mxu0 %v113
  %v464 = vpop.f32.mrb[0].mxu0
  %v465 = vadd.f32 0.0, %v464
  %v466 = vpop.f32.mrb[0].mxu0
  %v467 = vadd.f32 0.0, %v466
  %v468 = vpop.f32.mrb[0].mxu0
  %v469 = vadd.f32 0.0, %v468
  %v470 = vpop.f32.mrb[0].mxu0
  %v471 = vadd.f32 0.0, %v470
  %472 = vdwg.mxu0
  %473 = vmatprep.subr.bf16.mxu0 %v357
  %474 = vmatpush1.bf16.msra.mxu0 %v356
  %475 = vmatprep.subr.bf16.mxu0 %v359
  %476 = vmatpush1.bf16.msra.mxu0 %v358
  %477 = vmatprep.subr.bf16.mxu0 %v361
  %478 = vmatpush1.bf16.msra.mxu0 %v360
  %479 = vmatprep.subr.bf16.mxu0 %v363
  %480 = vmatpush1.bf16.msra.mxu0 %v362
  %481 = vmatprep.subr.bf16.mxu0 %v365
  %482 = vmatpush1.bf16.msra.mxu0 %v364
  %483 = vmatprep.subr.bf16.mxu0 %v367
  %484 = vmatpush1.bf16.msra.mxu0 %v366
  %485 = vmatprep.subr.bf16.mxu0 %v369
  %486 = vmatpush1.bf16.msra.mxu0 %v368
  %487 = vmatprep.subr.bf16.mxu0 %v371
  %488 = vmatpush1.bf16.msra.mxu0 %v370
  %489 = vmatprep.subr.bf16.mxu0 0
  %490 = vmatpush1.bf16.msra.mxu0 0
  %491 = vmatprep.subr.bf16.mxu0 0
  %492 = vmatpush1.bf16.msra.mxu0 0
  %493 = vmatprep.subr.bf16.mxu0 0
  %494 = vmatpush1.bf16.msra.mxu0 0
  %495 = vmatprep.subr.bf16.mxu0 0
  %496 = vmatpush1.bf16.msra.mxu0 0
  %497 = vmatprep.subr.bf16.mxu0 0
  %498 = vmatpush1.bf16.msra.mxu0 0
  %499 = vmatprep.subr.bf16.mxu0 0
  %500 = vmatpush1.bf16.msra.mxu0 0
  %501 = vmatprep.subr.bf16.mxu0 0
  %502 = vmatpush1.bf16.msra.mxu0 0
  %503 = vmatprep.subr.bf16.mxu0 0
  %504 = vmatpush1.bf16.msra.mxu0 0
  %505 = vmatprep.mubr.bf16.mxu0 0
  %506 = vmatmul.mubr.bf16.gmra.mrb[0].mxu0 %v128
  %v507 = vpop.f32.mrb[0].mxu0
  %v508 = vadd.f32 %v455, %v507
  %v509 = vpop.f32.mrb[0].mxu0
  %v510 = vadd.f32 %v457, %v509
  %v511 = vpop.f32.mrb[0].mxu0
  %v512 = vadd.f32 %v459, %v511
  %v513 = vpop.f32.mrb[0].mxu0
  %v514 = vadd.f32 %v461, %v513
  %515 = vmatprep.mubr.bf16.mxu0 0
  %516 = vmatmul.mubr.bf16.gmra.mrb[0].mxu0 %v129
  %v517 = vpop.f32.mrb[0].mxu0
  %v518 = vadd.f32 %v465, %v517
  %v519 = vpop.f32.mrb[0].mxu0
  %v520 = vadd.f32 %v467, %v519
  %v521 = vpop.f32.mrb[0].mxu0
  %v522 = vadd.f32 %v469, %v521
  %v523 = vpop.f32.mrb[0].mxu0
  %v524 = vadd.f32 %v471, %v523
  %525 = vdwg.mxu0
  %v526 = vld [vmem:[%s3] sm:$0x1]
  %v527 = vlaneseq
  %v528 = vshrl.u32 %v527, 7
  %v529 = vsub.s32 0, %v528
  %v530 = vrot.slane %v526, %v529
  %v531 = vadd.f32 %v508, %v530
  %v532 = vadd.f32 %v512, %v530
  %v533 = vadd.f32 %v518, %v530
  %v534 = vadd.f32 %v522, %v530
  %v535 = vld [vmem:[%s3 + $0x2] sm:$0x1]
  %v536 = vlaneseq
  %v537 = vshrl.u32 %v536, 7
  %v538 = vsub.s32 0, %v537
  %v539 = vrot.slane %v535, %v538
  %v540 = vadd.f32 %v510, %v539
  %v541 = vadd.f32 %v514, %v539
  %v542 = vadd.f32 %v520, %v539
  %v543 = vadd.f32 %v524, %v539
  %v544 = vld [vmem:[%s4] sm:$0x1]
  %v545 = vld [vmem:[%s4 + $0x1] sm:$0x1]
  %v546 = vadd.f32 %v531, %v532
  %v547 = vadd.f32 %v546, %v533
  %v548 = vadd.f32 %v547, %v534
  %v549 = vrot.slane %v548, 4
  %v550 = vadd.f32 %v548, %v549
  %v551 = vrot.slane %v550, 2
  %v552 = vadd.f32 %v550, %v551
  %v553 = vrot.slane %v552, 1
  %v554 = vadd.f32 %v552, %v553
  %v555 = vmul.f32 %v531, %v531
  %v556 = vmul.f32 %v532, %v532
  %v557 = vmul.f32 %v533, %v533
  %v558 = vmul.f32 %v534, %v534
  %v559 = vadd.f32 %v555, %v556
  %v560 = vadd.f32 %v559, %v557
  %v561 = vadd.f32 %v560, %v558
  %v562 = vrot.slane %v561, 4
  %v563 = vadd.f32 %v561, %v562
  %v564 = vrot.slane %v563, 2
  %v565 = vadd.f32 %v563, %v564
  %v566 = vrot.slane %v565, 1
  %v567 = vadd.f32 %v565, %v566
  %vm568 = vcmask 1040384
  %v569 = vsel %vm568, %v554, %v567
  %v570 = vld [vmem:[%s5] sm:$0xff]
  %v571 = vld [vmem:[%s5 + $0x8] sm:$0xff]
  %v572 = vld [vmem:[%s5 + $0x10] sm:$0xff]
  %v573 = vld [vmem:[%s5 + $0x18] sm:$0xff]
  %v574 = vld [vmem:[%s5 + $0x20] sm:$0xff]
  %v575 = vld [vmem:[%s5 + $0x28] sm:$0xff]
  %v576 = vld [vmem:[%s5 + $0x30] sm:$0xff]
  %v577 = vld [vmem:[%s5 + $0x38] sm:$0xff]
  %v578 = vld [vmem:[%s5 + $0x40] sm:$0xff]
  %v579 = vld [vmem:[%s5 + $0x48] sm:$0xff]
  %v580 = vld [vmem:[%s5 + $0x50] sm:$0xff]
  %v581 = vld [vmem:[%s5 + $0x58] sm:$0xff]
  %v582 = vld [vmem:[%s5 + $0x60] sm:$0xff]
  %v583 = vld [vmem:[%s5 + $0x68] sm:$0xff]
  %v584 = vld [vmem:[%s5 + $0x70] sm:$0xff]
  %v585 = vld [vmem:[%s5 + $0x78] sm:$0xff]
  %586 = vmatprep.subr.mxu0 0.0
  %587 = vmatpush1.msra.mxu0 %v570
  %588 = vmatprep.subr.mxu0 0.0
  %589 = vmatpush1.msra.mxu0 %v571
  %590 = vmatprep.subr.mxu0 0.0
  %591 = vmatpush1.msra.mxu0 %v572
  %592 = vmatprep.subr.mxu0 0.0
  %593 = vmatpush1.msra.mxu0 %v573
  %594 = vmatprep.subr.mxu0 0.0
  %595 = vmatpush1.msra.mxu0 %v574
  %596 = vmatprep.subr.mxu0 0.0
  %597 = vmatpush1.msra.mxu0 %v575
  %598 = vmatprep.subr.mxu0 0.0
  %599 = vmatpush1.msra.mxu0 %v576
  %600 = vmatprep.subr.mxu0 0.0
  %601 = vmatpush1.msra.mxu0 %v577
  %602 = vmatprep.subr.mxu0 0.0
  %603 = vmatpush1.msra.mxu0 %v578
  %604 = vmatprep.subr.mxu0 0.0
  %605 = vmatpush1.msra.mxu0 %v579
  %606 = vmatprep.subr.mxu0 0.0
  %607 = vmatpush1.msra.mxu0 %v580
  %608 = vmatprep.subr.mxu0 0.0
  %609 = vmatpush1.msra.mxu0 %v581
  %610 = vmatprep.subr.mxu0 0.0
  %611 = vmatpush1.msra.mxu0 %v582
  %612 = vmatprep.subr.mxu0 0.0
  %613 = vmatpush1.msra.mxu0 %v583
  %614 = vmatprep.subr.mxu0 0.0
  %615 = vmatpush1.msra.mxu0 %v584
  %616 = vmatprep.subr.mxu0 0.0
  %617 = vmatpush1.msra.mxu0 %v585
  %618 = vmatprep.subr.mxu0 0.0
  %619 = vmatpush1.msra.mxu0 0.0
  %620 = vmatprep.subr.mxu0 0.0
  %621 = vmatpush1.msra.mxu0 0.0
  %622 = vmatprep.subr.mxu0 0.0
  %623 = vmatpush1.msra.mxu0 0.0
  %624 = vmatprep.subr.mxu0 0.0
  %625 = vmatpush1.msra.mxu0 0.0
  %626 = vmatprep.subr.mxu0 0.0
  %627 = vmatpush1.msra.mxu0 0.0
  %628 = vmatprep.subr.mxu0 0.0
  %629 = vmatpush1.msra.mxu0 0.0
  %630 = vmatprep.subr.mxu0 0.0
  %631 = vmatpush1.msra.mxu0 0.0
  %632 = vmatprep.subr.mxu0 0.0
  %633 = vmatpush1.msra.mxu0 0.0
  %634 = vmatprep.subr.mxu0 0.0
  %635 = vmatpush1.msra.mxu0 0.0
  %636 = vmatprep.subr.mxu0 0.0
  %637 = vmatpush1.msra.mxu0 0.0
  %638 = vmatprep.subr.mxu0 0.0
  %639 = vmatpush1.msra.mxu0 0.0
  %640 = vmatprep.subr.mxu0 0.0
  %641 = vmatpush1.msra.mxu0 0.0
  %642 = vmatprep.subr.mxu0 0.0
  %643 = vmatpush1.msra.mxu0 0.0
  %644 = vmatprep.subr.mxu0 0.0
  %645 = vmatpush1.msra.mxu0 0.0
  %646 = vmatprep.subr.mxu0 0.0
  %647 = vmatpush1.msra.mxu0 0.0
  %648 = vmatprep.subr.mxu0 0.0
  %649 = vmatpush1.msra.mxu0 0.0
  %650 = vmatprep.mubr.f32.mxu0 0.0
  %651 = vmatmul.mubr.f32.gmra.mrb[0].mxu0 %v569
  %v652 = vpop.f32.mrb[0].mxu0
  %v653 = vadd.f32 0.0, %v652
  %v654 = vpop.f32.mrb[0].mxu0
  %655 = vdwg.mxu0
  %v656 = vmul.f32 %v653, 0.001953125
  %v657 = vmul.f32 %v656, %v656
  %v659 = vrot.slane %v657, 7
  %v661 = vsub.f32 %v656, %v659
  %v662 = vadd.f32 %v661, 1e-05
  %v663 = vrsqrt.pop %v662
  %v665 = vrot.slane %v663, 1
  %v667 = vmul.f32 %v544, %v665
  %v668 = vmul.f32 %v656, %v667
  %v669 = vsub.f32 %v545, %v668
  %v671 = vrot.slane %v669, 7
  %v673 = vsel %vm568, %v667, %v671
  %675 = vrot.lane.b32.xlu0 %v673, 8
  %v676 = vpop.permute.xlu0 %675
  %678 = vrot.lane.b32.xlu0 %v673, 16
  %v679 = vpop.permute.xlu0 %678
  %681 = vrot.lane.b32.xlu0 %v673, 24
  %v682 = vpop.permute.xlu0 %681
  %684 = vrot.lane.b32.xlu0 %v673, 32
  %v685 = vpop.permute.xlu0 %684
  %687 = vrot.lane.b32.xlu0 %v673, 40
  %v688 = vpop.permute.xlu0 %687
  %690 = vrot.lane.b32.xlu0 %v673, 48
  %v691 = vpop.permute.xlu0 %690
  %693 = vrot.lane.b32.xlu0 %v673, 56
  %v694 = vpop.permute.xlu0 %693
  %696 = vrot.lane.b32.xlu0 %v673, 64
  %v697 = vpop.permute.xlu0 %696
  %699 = vrot.lane.b32.xlu0 %v673, 72
  %v700 = vpop.permute.xlu0 %699
  %702 = vrot.lane.b32.xlu0 %v673, 80
  %v703 = vpop.permute.xlu0 %702
  %705 = vrot.lane.b32.xlu0 %v673, 88
  %v706 = vpop.permute.xlu0 %705
  %708 = vrot.lane.b32.xlu0 %v673, 96
  %v709 = vpop.permute.xlu0 %708
  %711 = vrot.lane.b32.xlu0 %v673, 104
  %v712 = vpop.permute.xlu0 %711
  %714 = vrot.lane.b32.xlu0 %v673, 112
  %v715 = vpop.permute.xlu0 %714
  %717 = vrot.lane.b32.xlu0 %v673, 120
  %v718 = vpop.permute.xlu0 %717
  %vm720 = vcmask 64512
  %v721 = vsel %vm720, %v673, %v676
  %vm722 = vcmask 130048
  %v723 = vsel %vm722, %v721, %v679
  %vm724 = vcmask 195584
  %v725 = vsel %vm724, %v723, %v682
  %vm726 = vcmask 261120
  %v727 = vsel %vm726, %v725, %v685
  %vm728 = vcmask 326656
  %v729 = vsel %vm728, %v727, %v688
  %vm730 = vcmask 392192
  %v731 = vsel %vm730, %v729, %v691
  %vm732 = vcmask 457728
  %v733 = vsel %vm732, %v731, %v694
  %vm734 = vcmask 523264
  %v735 = vsel %vm734, %v733, %v697
  %vm736 = vcmask 588800
  %v737 = vsel %vm736, %v735, %v700
  %vm738 = vcmask 654336
  %v739 = vsel %vm738, %v737, %v703
  %vm740 = vcmask 719872
  %v741 = vsel %vm740, %v739, %v706
  %vm742 = vcmask 785408
  %v743 = vsel %vm742, %v741, %v709
  %vm744 = vcmask 850944
  %v745 = vsel %vm744, %v743, %v712
  %vm746 = vcmask 916480
  %v747 = vsel %vm746, %v745, %v715
  %vm748 = vcmask 982016
  %v749 = vsel %vm748, %v747, %v718
  %v750 = vlaneseq
  %v751 = vshrl.u32 %v750, 7
  %v752 = vsub.s32 0, %v751
  %v753 = vrot.slane %v749, %v752
  %v754 = vmul.f32 %v531, %v753
  %v755 = vmul.f32 %v532, %v753
  %v756 = vmul.f32 %v533, %v753
  %v757 = vmul.f32 %v534, %v753
  %v758 = vlaneseq
  %v759 = vshrl.u32 %v758, 7
  %v760 = vsub.s32 1, %v759
  %v761 = vrot.slane %v749, %v760
  %v762 = vadd.f32 %v754, %v761
  %v763 = vadd.f32 %v755, %v761
  %v764 = vadd.f32 %v756, %v761
  %v765 = vadd.f32 %v757, %v761
  %v766 = vmax.f32 %v762, 0.0
  %v767 = vmax.f32 %v763, 0.0
  %v768 = vmax.f32 %v764, 0.0
  %v769 = vmax.f32 %v765, 0.0
  %vm770 = vcmask 1040384
  %vm771 = vsmask.f32 256
  %vm772 = vmand %vm770, %vm771
  %v773 = vld [vmem:[#allocation2] sm:$0x1]
  %v774 = vsel %vm772, 0, %v773
  %775 = vst [vmem:[#allocation2] sm:$0x1] %v774
  %v776 = vld [vmem:[#allocation2 + $0xc] sm:$0x1]
  %v777 = vsel %vm772, 0, %v776
  %778 = vst [vmem:[#allocation2 + $0xc] sm:$0x1] %v777
  %vm779 = vsmask.f32 7938
  %vm780 = vmand %vm770, %vm779
  %v781 = vld [vmem:[#allocation2 + $0x8] sm:$0x1]
  %v782 = vsel %vm780, 0, %v781
  %783 = vst [vmem:[#allocation2 + $0x8] sm:$0x1] %v782
  %v784 = vld [vmem:[#allocation2 + $0x14] sm:$0x1]
  %v785 = vsel %vm780, 0, %v784
  %786 = vst [vmem:[#allocation2 + $0x14] sm:$0x1] %v785
  %v787 = vpack.c.bf16 %v767, %v766
  %v788 = vpack.c.bf16 %v769, %v768
  %v791 = vunpack.c.l.b16 %v787
  %v792 = vunpack.c.h.b16 %v787
  %v793 = vunpack.c.l.b16 %v788
  %v794 = vunpack.c.h.b16 %v788
  %v795 = vpack.c.b16 %v791, %v791
  %v796 = vpack.c.b16 %v792, %v792
  %v797 = vpack.c.b16 %v793, %v793
  %v798 = vpack.c.b16 %v794, %v794
  %vm799 = vsmask.f32 4368
  %vm800 = vmor %vm771, %vm799
  %v802 = vshrl.u32 %v795, 16
  %v804 = vrot.slane %v802, 7
  %v805 = vshll.u32 %v795, 16
  %v807 = vor.u32 %v804, %v805
  %v808 = vrot.slane %v804, 4
  %v810 = vshrl.u32 %v796, 16
  %v812 = vrot.slane %v810, 7
  %v813 = vshll.u32 %v796, 16
  %v815 = vor.u32 %v812, %v813
  %v816 = vsel %vm800, %v808, %v815
  %v817 = vrot.slane %v812, 4
  %v819 = vshrl.u32 %v797, 16
  %v821 = vrot.slane %v819, 7
  %v822 = vshll.u32 %v797, 16
  %v824 = vor.u32 %v821, %v822
  %v825 = vrot.slane %v821, 4
  %v827 = vshrl.u32 %v798, 16
  %v829 = vrot.slane %v827, 7
  %v830 = vshll.u32 %v798, 16
  %v832 = vor.u32 %v829, %v830
  %v833 = vsel %vm800, %v825, %v832
  %v834 = vrot.slane %v829, 4
  %vm841 = vcmask 1043456
  %vm842 = vmand %vm841, %vm779
  %v843 = vld [vmem:[#allocation2] sm:$0xf]
  %v844 = vsel %vm842, %v807, %v843
  %845 = vst [vmem:[#allocation2] sm:$0xf] %v844
  %846 = vst [vmem:[#allocation2 + $0x4] sm:$0xf] %v816
  %v847 = vld [vmem:[#allocation2 + $0x8] sm:$0x1]
  %v848 = vsel %vm772, %v817, %v847
  %849 = vst [vmem:[#allocation2 + $0x8] sm:$0x1] %v848
  %v850 = vld [vmem:[#allocation2 + $0xc] sm:$0xf]
  %v851 = vsel %vm842, %v824, %v850
  %852 = vst [vmem:[#allocation2 + $0xc] sm:$0xf] %v851
  %853 = vst [vmem:[#allocation2 + $0x10] sm:$0xf] %v833
  %v854 = vld [vmem:[#allocation2 + $0x14] sm:$0x1]
  %v855 = vsel %vm772, %v834, %v854
  %856 = vst [vmem:[#allocation2 + $0x14] sm:$0x1] %v855
  %v857 = vld [vmem:[#allocation2] sm:$0xf]
  %v858 = vld [vmem:[#allocation2 + $0x4] sm:$0xf]
  %v859 = vld [vmem:[#allocation2 + $0xc] sm:$0xf]
  %v860 = vld [vmem:[#allocation2 + $0x10] sm:$0xf]
  %v861 = vld [vmem:[#allocation2 + $0x8] sm:$0x1]
  %v862 = vld [vmem:[#allocation2 + $0x14] sm:$0x1]
  %v864 = vshrl.u32 %v857, 16
  %v866 = vrot.slane %v864, 4
  %v867 = vshll.u32 %v857, 16
  %v869 = vrot.slane %v867, 5
  %v870 = vor.u32 %v866, %v869
  %v871 = vrot.slane %v870, 4
  %v873 = vshll.u32 %v858, 16
  %v875 = vrot.slane %v873, 5
  %v876 = vsel %vm32, %v871, %v875
  %v877 = vshrl.u32 %v858, 16
  %v879 = vrot.slane %v877, 4
  %v880 = vor.u32 %v879, %v875
  %v881 = vrot.slane %v880, 4
  %v883 = vshll.u32 %v861, 16
  %v885 = vrot.slane %v883, 5
  %v886 = vsel %vm32, %v881, %v885
  %v888 = vshrl.u32 %v859, 16
  %v890 = vrot.slane %v888, 4
  %v891 = vshll.u32 %v859, 16
  %v893 = vrot.slane %v891, 5
  %v894 = vor.u32 %v890, %v893
  %v895 = vrot.slane %v894, 4
  %v897 = vshll.u32 %v860, 16
  %v899 = vrot.slane %v897, 5
  %v900 = vsel %vm32, %v895, %v899
  %v901 = vshrl.u32 %v860, 16
  %v903 = vrot.slane %v901, 4
  %v904 = vor.u32 %v903, %v899
  %v905 = vrot.slane %v904, 4
  %v907 = vshll.u32 %v862, 16
  %v909 = vrot.slane %v907, 5
  %v910 = vsel %vm32, %v905, %v909
  %v911 = vld [vmem:[#allocation2] sm:$0xe]
  %v912 = vld [vmem:[#allocation2 + $0xc] sm:$0xe]
  %v919 = vrot.slane %v911, 5
  %v920 = vrot.slane %v919, 4
  %v921 = vrot.slane %v858, 5
  %v922 = vsel %vm91, %v920, %v921
  %v923 = vrot.slane %v921, 4
  %v924 = vrot.slane %v861, 5
  %v925 = vsel %vm91, %v923, %v924
  %v926 = vrot.slane %v912, 5
  %v927 = vrot.slane %v926, 4
  %v928 = vrot.slane %v860, 5
  %v929 = vsel %vm91, %v927, %v928
  %v930 = vrot.slane %v928, 4
  %v931 = vrot.slane %v862, 5
  %v932 = vsel %vm91, %v930, %v931
  %v935 = vunpack.c.l.b16 %v857
  %v936 = vunpack.c.l.b16 %v858
  %v937 = vunpack.c.l.b16 %v859
  %v938 = vunpack.c.l.b16 %v860
  %v939 = vpack.c.b16 %v936, %v935
  %v940 = vpack.c.b16 %v938, %v937
  %v943 = vunpack.c.l.b16 %v876
  %v944 = vunpack.c.l.b16 %v886
  %v945 = vunpack.c.l.b16 %v900
  %v946 = vunpack.c.l.b16 %v910
  %v947 = vpack.c.b16 %v944, %v943
  %v948 = vpack.c.b16 %v946, %v945
  %v951 = vunpack.c.l.b16 %v922
  %v952 = vunpack.c.l.b16 %v925
  %v953 = vunpack.c.l.b16 %v929
  %v954 = vunpack.c.l.b16 %v932
  %v955 = vpack.c.b16 %v952, %v951
  %v956 = vpack.c.b16 %v954, %v953
  %v959 = vld [vmem:[%s2] sm:$0xf]
  %v960 = vld [vmem:[%s2 + $0x4] sm:$0xf]
  %v961 = vld [vmem:[%s2 + $0x8] sm:$0xf]
  %v962 = vld [vmem:[%s2 + $0xc] sm:$0xf]
  %v963 = vld [vmem:[%s2 + $0x10] sm:$0xf]
  %v964 = vld [vmem:[%s2 + $0x14] sm:$0xf]
  %v965 = vld [vmem:[%s2 + $0x18] sm:$0xf]
  %v966 = vld [vmem:[%s2 + $0x1c] sm:$0xf]
  %v967 = vld [vmem:[%s2 + $0x20] sm:$0xf]
  %v968 = vld [vmem:[%s2 + $0x24] sm:$0xf]
  %v969 = vld [vmem:[%s2 + $0x28] sm:$0xf]
  %v970 = vld [vmem:[%s2 + $0x2c] sm:$0xf]
  %v971 = vld [vmem:[%s2 + $0x30] sm:$0xf]
  %v972 = vld [vmem:[%s2 + $0x34] sm:$0xf]
  %v973 = vld [vmem:[%s2 + $0x38] sm:$0xf]
  %v974 = vld [vmem:[%s2 + $0x3c] sm:$0xf]
  %v975 = vld [vmem:[%s2 + $0x40] sm:$0xf]
  %v976 = vld [vmem:[%s2 + $0x44] sm:$0xf]
  %v977 = vld [vmem:[%s2 + $0x48] sm:$0xf]
  %v978 = vld [vmem:[%s2 + $0x4c] sm:$0xf]
  %v979 = vld [vmem:[%s2 + $0x50] sm:$0xf]
  %v980 = vld [vmem:[%s2 + $0x54] sm:$0xf]
  %v981 = vld [vmem:[%s2 + $0x58] sm:$0xf]
  %v982 = vld [vmem:[%s2 + $0x5c] sm:$0xf]
  %v983 = vld [vmem:[%s2 + $0x60] sm:$0xf]
  %v984 = vld [vmem:[%s2 + $0x64] sm:$0xf]
  %v985 = vld [vmem:[%s2 + $0x68] sm:$0xf]
  %v986 = vld [vmem:[%s2 + $0x6c] sm:$0xf]
  %v987 = vld [vmem:[%s2 + $0x70] sm:$0xf]
  %v988 = vld [vmem:[%s2 + $0x74] sm:$0xf]
  %v989 = vld [vmem:[%s2 + $0x78] sm:$0xf]
  %v990 = vld [vmem:[%s2 + $0x7c] sm:$0xf]
  %v991 = vld [vmem:[%s2 + $0x80] sm:$0xf]
  %v992 = vld [vmem:[%s2 + $0x84] sm:$0xf]
  %v993 = vld [vmem:[%s2 + $0x88] sm:$0xf]
  %v994 = vld [vmem:[%s2 + $0x8c] sm:$0xf]
  %v995 = vld [vmem:[%s2 + $0x90] sm:$0xf]
  %v996 = vld [vmem:[%s2 + $0x94] sm:$0xf]
  %v997 = vld [vmem:[%s2 + $0x98] sm:$0xf]
  %v998 = vld [vmem:[%s2 + $0x9c] sm:$0xf]
  %v999 = vld [vmem:[%s2 + $0xa0] sm:$0xf]
  %v1000 = vld [vmem:[%s2 + $0xa4] sm:$0xf]
  %v1001 = vld [vmem:[%s2 + $0xa8] sm:$0xf]
  %v1002 = vld [vmem:[%s2 + $0xac] sm:$0xf]
  %v1003 = vld [vmem:[%s2 + $0xb0] sm:$0xf]
  %v1004 = vld [vmem:[%s2 + $0xb4] sm:$0xf]
  %v1005 = vld [vmem:[%s2 + $0xb8] sm:$0xf]
  %v1006 = vld [vmem:[%s2 + $0xbc] sm:$0xf]
  %v1007 = vld [vmem:[%s3 + $0x1] sm:$0x1]
  %v1008 = vlaneseq
  %v1009 = vshrl.u32 %v1008, 7
  %v1010 = vsub.s32 0, %v1009
  %v1011 = vrot.slane %v1007, %v1010
  %v1060 = vunpack.c.l.b16 %v959
  %v1061 = vunpack.c.l.b16 %v960
  %v1062 = vunpack.c.l.b16 %v961
  %v1063 = vunpack.c.l.b16 %v962
  %v1064 = vunpack.c.l.b16 %v963
  %v1065 = vunpack.c.l.b16 %v964
  %v1066 = vunpack.c.l.b16 %v965
  %v1067 = vunpack.c.l.b16 %v966
  %v1068 = vunpack.c.l.b16 %v967
  %v1069 = vunpack.c.l.b16 %v968
  %v1070 = vunpack.c.l.b16 %v969
  %v1071 = vunpack.c.l.b16 %v970
  %v1072 = vunpack.c.l.b16 %v971
  %v1073 = vunpack.c.l.b16 %v972
  %v1074 = vunpack.c.l.b16 %v973
  %v1075 = vunpack.c.l.b16 %v974
  %v1076 = vunpack.c.l.b16 %v975
  %v1077 = vunpack.c.l.b16 %v976
  %v1078 = vunpack.c.l.b16 %v977
  %v1079 = vunpack.c.l.b16 %v978
  %v1080 = vunpack.c.l.b16 %v979
  %v1081 = vunpack.c.l.b16 %v980
  %v1082 = vunpack.c.l.b16 %v981
  %v1083 = vunpack.c.l.b16 %v982
  %v1084 = vunpack.c.l.b16 %v983
  %v1085 = vunpack.c.l.b16 %v984
  %v1086 = vunpack.c.l.b16 %v985
  %v1087 = vunpack.c.l.b16 %v986
  %v1088 = vunpack.c.l.b16 %v987
  %v1089 = vunpack.c.l.b16 %v988
  %v1090 = vunpack.c.l.b16 %v989
  %v1091 = vunpack.c.l.b16 %v990
  %v1092 = vunpack.c.l.b16 %v991
  %v1093 = vunpack.c.l.b16 %v992
  %v1094 = vunpack.c.l.b16 %v993
  %v1095 = vunpack.c.l.b16 %v994
  %v1096 = vunpack.c.l.b16 %v995
  %v1097 = vunpack.c.l.b16 %v996
  %v1098 = vunpack.c.l.b16 %v997
  %v1099 = vunpack.c.l.b16 %v998
  %v1100 = vunpack.c.l.b16 %v999
  %v1101 = vunpack.c.l.b16 %v1000
  %v1102 = vunpack.c.l.b16 %v1001
  %v1103 = vunpack.c.l.b16 %v1002
  %v1104 = vunpack.c.l.b16 %v1003
  %v1105 = vunpack.c.l.b16 %v1004
  %v1106 = vunpack.c.l.b16 %v1005
  %v1107 = vunpack.c.l.b16 %v1006
  %v1108 = vpack.c.b16 %v1061, %v1060
  %v1109 = vpack.c.b16 %v1063, %v1062
  %v1110 = vpack.c.b16 %v1065, %v1064
  %v1111 = vpack.c.b16 %v1067, %v1066
  %v1112 = vpack.c.b16 %v1069, %v1068
  %v1113 = vpack.c.b16 %v1071, %v1070
  %v1114 = vpack.c.b16 %v1073, %v1072
  %v1115 = vpack.c.b16 %v1075, %v1074
  %v1116 = vpack.c.b16 %v1077, %v1076
  %v1117 = vpack.c.b16 %v1079, %v1078
  %v1118 = vpack.c.b16 %v1081, %v1080
  %v1119 = vpack.c.b16 %v1083, %v1082
  %v1120 = vpack.c.b16 %v1085, %v1084
  %v1121 = vpack.c.b16 %v1087, %v1086
  %v1122 = vpack.c.b16 %v1089, %v1088
  %v1123 = vpack.c.b16 %v1091, %v1090
  %v1124 = vpack.c.b16 %v1093, %v1092
  %v1125 = vpack.c.b16 %v1095, %v1094
  %v1126 = vpack.c.b16 %v1097, %v1096
  %v1127 = vpack.c.b16 %v1099, %v1098
  %v1128 = vpack.c.b16 %v1101, %v1100
  %v1129 = vpack.c.b16 %v1103, %v1102
  %v1130 = vpack.c.b16 %v1105, %v1104
  %v1131 = vpack.c.b16 %v1107, %v1106
  %1156 = vmatprep.subr.bf16.mxu0 0
  %1157 = vmatpush1.bf16.msra.mxu0 %v1108
  %1158 = vmatprep.subr.bf16.mxu0 0
  %1159 = vmatpush1.bf16.msra.mxu0 %v1109
  %1160 = vmatprep.subr.bf16.mxu0 0
  %1161 = vmatpush1.bf16.msra.mxu0 %v1110
  %1162 = vmatprep.subr.bf16.mxu0 0
  %1163 = vmatpush1.bf16.msra.mxu0 %v1111
  %1164 = vmatprep.subr.bf16.mxu0 0
  %1165 = vmatpush1.bf16.msra.mxu0 %v1112
  %1166 = vmatprep.subr.bf16.mxu0 0
  %1167 = vmatpush1.bf16.msra.mxu0 %v1113
  %1168 = vmatprep.subr.bf16.mxu0 0
  %1169 = vmatpush1.bf16.msra.mxu0 %v1114
  %1170 = vmatprep.subr.bf16.mxu0 0
  %1171 = vmatpush1.bf16.msra.mxu0 %v1115
  %1172 = vmatprep.subr.bf16.mxu0 0
  %1173 = vmatpush1.bf16.msra.mxu0 %v1116
  %1174 = vmatprep.subr.bf16.mxu0 0
  %1175 = vmatpush1.bf16.msra.mxu0 %v1117
  %1176 = vmatprep.subr.bf16.mxu0 0
  %1177 = vmatpush1.bf16.msra.mxu0 %v1118
  %1178 = vmatprep.subr.bf16.mxu0 0
  %1179 = vmatpush1.bf16.msra.mxu0 %v1119
  %1180 = vmatprep.subr.bf16.mxu0 0
  %1181 = vmatpush1.bf16.msra.mxu0 %v1120
  %1182 = vmatprep.subr.bf16.mxu0 0
  %1183 = vmatpush1.bf16.msra.mxu0 %v1121
  %1184 = vmatprep.subr.bf16.mxu0 0
  %1185 = vmatpush1.bf16.msra.mxu0 %v1122
  %1186 = vmatprep.subr.bf16.mxu0 0
  %1187 = vmatpush1.bf16.msra.mxu0 %v1123
  %1188 = vmatprep.mubr.bf16.mxu0 %v947
  %1189 = vmatmul.mubr.bf16.gmra.mrb[0].mxu0 %v939
  %v1190 = vpop.f32.mrb[0].mxu0
  %v1191 = vadd.f32 %v1011, %v1190
  %v1192 = vpop.f32.mrb[0].mxu0
  %v1193 = vpop.f32.mrb[0].mxu0
  %v1194 = vadd.f32 %v1011, %v1193
  %v1195 = vpop.f32.mrb[0].mxu0
  %1196 = vmatprep.mubr.bf16.mxu0 %v948
  %1197 = vmatmul.mubr.bf16.gmra.mrb[0].mxu0 %v940
  %v1198 = vpop.f32.mrb[0].mxu0
  %v1199 = vadd.f32 %v1011, %v1198
  %v1200 = vpop.f32.mrb[0].mxu0
  %v1201 = vpop.f32.mrb[0].mxu0
  %v1202 = vadd.f32 %v1011, %v1201
  %v1203 = vpop.f32.mrb[0].mxu0
  %1204 = vdwg.mxu0
  %1205 = vmatprep.subr.bf16.mxu0 0
  %1206 = vmatpush1.bf16.msra.mxu0 %v1124
  %1207 = vmatprep.subr.bf16.mxu0 0
  %1208 = vmatpush1.bf16.msra.mxu0 %v1125
  %1209 = vmatprep.subr.bf16.mxu0 0
  %1210 = vmatpush1.bf16.msra.mxu0 %v1126
  %1211 = vmatprep.subr.bf16.mxu0 0
  %1212 = vmatpush1.bf16.msra.mxu0 %v1127
  %1213 = vmatprep.subr.bf16.mxu0 0
  %1214 = vmatpush1.bf16.msra.mxu0 %v1128
  %1215 = vmatprep.subr.bf16.mxu0 0
  %1216 = vmatpush1.bf16.msra.mxu0 %v1129
  %1217 = vmatprep.subr.bf16.mxu0 0
  %1218 = vmatpush1.bf16.msra.mxu0 %v1130
  %1219 = vmatprep.subr.bf16.mxu0 0
  %1220 = vmatpush1.bf16.msra.mxu0 %v1131
  %1221 = vmatprep.subr.bf16.mxu0 0
  %1222 = vmatpush1.bf16.msra.mxu0 0
  %1223 = vmatprep.subr.bf16.mxu0 0
  %1224 = vmatpush1.bf16.msra.mxu0 0
  %1225 = vmatprep.subr.bf16.mxu0 0
  %1226 = vmatpush1.bf16.msra.mxu0 0
  %1227 = vmatprep.subr.bf16.mxu0 0
  %1228 = vmatpush1.bf16.msra.mxu0 0
  %1229 = vmatprep.subr.bf16.mxu0 0
  %1230 = vmatpush1.bf16.msra.mxu0 0
  %1231 = vmatprep.subr.bf16.mxu0 0
  %1232 = vmatpush1.bf16.msra.mxu0 0
  %1233 = vmatprep.subr.bf16.mxu0 0
  %1234 = vmatpush1.bf16.msra.mxu0 0
  %1235 = vmatprep.subr.bf16.mxu0 0
  %1236 = vmatpush1.bf16.msra.mxu0 0
  %1237 = vmatprep.mubr.bf16.mxu0 0
  %1238 = vmatmul.mubr.bf16.gmra.mrb[0].mxu0 %v955
  %v1239 = vpop.f32.mrb[0].mxu0
  %v1240 = vadd.f32 %v1191, %v1239
  %v1241 = vpop.f32.mrb[0].mxu0
  %v1242 = vpop.f32.mrb[0].mxu0
  %v1243 = vadd.f32 %v1194, %v1242
  %v1244 = vpop.f32.mrb[0].mxu0
  %1245 = vmatprep.mubr.bf16.mxu0 0
  %1246 = vmatmul.mubr.bf16.gmra.mrb[0].mxu0 %v956
  %v1247 = vpop.f32.mrb[0].mxu0
  %v1248 = vadd.f32 %v1199, %v1247
  %v1249 = vpop.f32.mrb[0].mxu0
  %v1250 = vpop.f32.mrb[0].mxu0
  %v1251 = vadd.f32 %v1202, %v1250
  %v1252 = vpop.f32.mrb[0].mxu0
  %1253 = vdwg.mxu0
  %v1254 = vld [vmem:[%s4 + $0x2] sm:$0x1]
  %v1255 = vld [vmem:[%s4 + $0x3] sm:$0x1]
  %v1256 = vadd.f32 %v1240, %v1243
  %v1257 = vadd.f32 %v1256, %v1248
  %v1258 = vadd.f32 %v1257, %v1251
  %v1259 = vrot.slane %v1258, 4
  %v1260 = vadd.f32 %v1258, %v1259
  %v1261 = vrot.slane %v1260, 2
  %v1262 = vadd.f32 %v1260, %v1261
  %v1263 = vrot.slane %v1262, 1
  %v1264 = vadd.f32 %v1262, %v1263
  %v1265 = vmul.f32 %v1240, %v1240
  %v1266 = vmul.f32 %v1243, %v1243
  %v1267 = vmul.f32 %v1248, %v1248
  %v1268 = vmul.f32 %v1251, %v1251
  %v1269 = vadd.f32 %v1265, %v1266
  %v1270 = vadd.f32 %v1269, %v1267
  %v1271 = vadd.f32 %v1270, %v1268
  %v1272 = vrot.slane %v1271, 4
  %v1273 = vadd.f32 %v1271, %v1272
  %v1274 = vrot.slane %v1273, 2
  %v1275 = vadd.f32 %v1273, %v1274
  %v1276 = vrot.slane %v1275, 1
  %v1277 = vadd.f32 %v1275, %v1276
  %v1278 = vsel %vm568, %v1264, %v1277
  %v1279 = vld [vmem:[%s5] sm:$0xff]
  %v1280 = vld [vmem:[%s5 + $0x8] sm:$0xff]
  %v1281 = vld [vmem:[%s5 + $0x10] sm:$0xff]
  %v1282 = vld [vmem:[%s5 + $0x18] sm:$0xff]
  %v1283 = vld [vmem:[%s5 + $0x20] sm:$0xff]
  %v1284 = vld [vmem:[%s5 + $0x28] sm:$0xff]
  %v1285 = vld [vmem:[%s5 + $0x30] sm:$0xff]
  %v1286 = vld [vmem:[%s5 + $0x38] sm:$0xff]
  %v1287 = vld [vmem:[%s5 + $0x40] sm:$0xff]
  %v1288 = vld [vmem:[%s5 + $0x48] sm:$0xff]
  %v1289 = vld [vmem:[%s5 + $0x50] sm:$0xff]
  %v1290 = vld [vmem:[%s5 + $0x58] sm:$0xff]
  %v1291 = vld [vmem:[%s5 + $0x60] sm:$0xff]
  %v1292 = vld [vmem:[%s5 + $0x68] sm:$0xff]
  %v1293 = vld [vmem:[%s5 + $0x70] sm:$0xff]
  %v1294 = vld [vmem:[%s5 + $0x78] sm:$0xff]
  %1295 = vmatprep.subr.mxu0 0.0
  %1296 = vmatpush1.msra.mxu0 %v1279
  %1297 = vmatprep.subr.mxu0 0.0
  %1298 = vmatpush1.msra.mxu0 %v1280
  %1299 = vmatprep.subr.mxu0 0.0
  %1300 = vmatpush1.msra.mxu0 %v1281
  %1301 = vmatprep.subr.mxu0 0.0
  %1302 = vmatpush1.msra.mxu0 %v1282
  %1303 = vmatprep.subr.mxu0 0.0
  %1304 = vmatpush1.msra.mxu0 %v1283
  %1305 = vmatprep.subr.mxu0 0.0
  %1306 = vmatpush1.msra.mxu0 %v1284
  %1307 = vmatprep.subr.mxu0 0.0
  %1308 = vmatpush1.msra.mxu0 %v1285
  %1309 = vmatprep.subr.mxu0 0.0
  %1310 = vmatpush1.msra.mxu0 %v1286
  %1311 = vmatprep.subr.mxu0 0.0
  %1312 = vmatpush1.msra.mxu0 %v1287
  %1313 = vmatprep.subr.mxu0 0.0
  %1314 = vmatpush1.msra.mxu0 %v1288
  %1315 = vmatprep.subr.mxu0 0.0
  %1316 = vmatpush1.msra.mxu0 %v1289
  %1317 = vmatprep.subr.mxu0 0.0
  %1318 = vmatpush1.msra.mxu0 %v1290
  %1319 = vmatprep.subr.mxu0 0.0
  %1320 = vmatpush1.msra.mxu0 %v1291
  %1321 = vmatprep.subr.mxu0 0.0
  %1322 = vmatpush1.msra.mxu0 %v1292
  %1323 = vmatprep.subr.mxu0 0.0
  %1324 = vmatpush1.msra.mxu0 %v1293
  %1325 = vmatprep.subr.mxu0 0.0
  %1326 = vmatpush1.msra.mxu0 %v1294
  %1327 = vmatprep.subr.mxu0 0.0
  %1328 = vmatpush1.msra.mxu0 0.0
  %1329 = vmatprep.subr.mxu0 0.0
  %1330 = vmatpush1.msra.mxu0 0.0
  %1331 = vmatprep.subr.mxu0 0.0
  %1332 = vmatpush1.msra.mxu0 0.0
  %1333 = vmatprep.subr.mxu0 0.0
  %1334 = vmatpush1.msra.mxu0 0.0
  %1335 = vmatprep.subr.mxu0 0.0
  %1336 = vmatpush1.msra.mxu0 0.0
  %1337 = vmatprep.subr.mxu0 0.0
  %1338 = vmatpush1.msra.mxu0 0.0
  %1339 = vmatprep.subr.mxu0 0.0
  %1340 = vmatpush1.msra.mxu0 0.0
  %1341 = vmatprep.subr.mxu0 0.0
  %1342 = vmatpush1.msra.mxu0 0.0
  %1343 = vmatprep.subr.mxu0 0.0
  %1344 = vmatpush1.msra.mxu0 0.0
  %1345 = vmatprep.subr.mxu0 0.0
  %1346 = vmatpush1.msra.mxu0 0.0
  %1347 = vmatprep.subr.mxu0 0.0
  %1348 = vmatpush1.msra.mxu0 0.0
  %1349 = vmatprep.subr.mxu0 0.0
  %1350 = vmatpush1.msra.mxu0 0.0
  %1351 = vmatprep.subr.mxu0 0.0
  %1352 = vmatpush1.msra.mxu0 0.0
  %1353 = vmatprep.subr.mxu0 0.0
  %1354 = vmatpush1.msra.mxu0 0.0
  %1355 = vmatprep.subr.mxu0 0.0
  %1356 = vmatpush1.msra.mxu0 0.0
  %1357 = vmatprep.subr.mxu0 0.0
  %1358 = vmatpush1.msra.mxu0 0.0
  %1359 = vmatprep.mubr.f32.mxu0 0.0
  %1360 = vmatmul.mubr.f32.gmra.mrb[0].mxu0 %v1278
  %v1361 = vpop.f32.mrb[0].mxu0
  %v1362 = vadd.f32 0.0, %v1361
  %v1363 = vpop.f32.mrb[0].mxu0
  %1364 = vdwg.mxu0
  %v1365 = vmul.f32 %v1362, 0.001953125
  %v1366 = vmul.f32 %v1365, %v1365
  %v1368 = vrot.slane %v1366, 7
  %v1370 = vsub.f32 %v1365, %v1368
  %v1371 = vadd.f32 %v1370, 1e-05
  %v1372 = vrsqrt.pop %v1371
  %v1374 = vrot.slane %v1372, 1
  %v1376 = vmul.f32 %v1254, %v1374
  %v1377 = vmul.f32 %v1365, %v1376
  %v1378 = vsub.f32 %v1255, %v1377
  %v1380 = vrot.slane %v1378, 7
  %v1382 = vsel %vm568, %v1376, %v1380
  %1384 = vrot.lane.b32.xlu0 %v1382, 8
  %v1385 = vpop.permute.xlu0 %1384
  %1387 = vrot.lane.b32.xlu0 %v1382, 16
  %v1388 = vpop.permute.xlu0 %1387
  %1390 = vrot.lane.b32.xlu0 %v1382, 24
  %v1391 = vpop.permute.xlu0 %1390
  %1393 = vrot.lane.b32.xlu0 %v1382, 32
  %v1394 = vpop.permute.xlu0 %1393
  %1396 = vrot.lane.b32.xlu0 %v1382, 40
  %v1397 = vpop.permute.xlu0 %1396
  %1399 = vrot.lane.b32.xlu0 %v1382, 48
  %v1400 = vpop.permute.xlu0 %1399
  %1402 = vrot.lane.b32.xlu0 %v1382, 56
  %v1403 = vpop.permute.xlu0 %1402
  %1405 = vrot.lane.b32.xlu0 %v1382, 64
  %v1406 = vpop.permute.xlu0 %1405
  %1408 = vrot.lane.b32.xlu0 %v1382, 72
  %v1409 = vpop.permute.xlu0 %1408
  %1411 = vrot.lane.b32.xlu0 %v1382, 80
  %v1412 = vpop.permute.xlu0 %1411
  %1414 = vrot.lane.b32.xlu0 %v1382, 88
  %v1415 = vpop.permute.xlu0 %1414
  %1417 = vrot.lane.b32.xlu0 %v1382, 96
  %v1418 = vpop.permute.xlu0 %1417
  %1420 = vrot.lane.b32.xlu0 %v1382, 104
  %v1421 = vpop.permute.xlu0 %1420
  %1423 = vrot.lane.b32.xlu0 %v1382, 112
  %v1424 = vpop.permute.xlu0 %1423
  %1426 = vrot.lane.b32.xlu0 %v1382, 120
  %v1427 = vpop.permute.xlu0 %1426
  %v1429 = vsel %vm720, %v1382, %v1385
  %v1430 = vsel %vm722, %v1429, %v1388
  %v1431 = vsel %vm724, %v1430, %v1391
  %v1432 = vsel %vm726, %v1431, %v1394
  %v1433 = vsel %vm728, %v1432, %v1397
  %v1434 = vsel %vm730, %v1433, %v1400
  %v1435 = vsel %vm732, %v1434, %v1403
  %v1436 = vsel %vm734, %v1435, %v1406
  %v1437 = vsel %vm736, %v1436, %v1409
  %v1438 = vsel %vm738, %v1437, %v1412
  %v1439 = vsel %vm740, %v1438, %v1415
  %v1440 = vsel %vm742, %v1439, %v1418
  %v1441 = vsel %vm744, %v1440, %v1421
  %v1442 = vsel %vm746, %v1441, %v1424
  %v1443 = vsel %vm748, %v1442, %v1427
  %v1444 = vlaneseq
  %v1445 = vshrl.u32 %v1444, 7
  %v1446 = vsub.s32 0, %v1445
  %v1447 = vrot.slane %v1443, %v1446
  %v1448 = vmul.f32 %v1240, %v1447
  %v1449 = vmul.f32 %v1243, %v1447
  %v1450 = vmul.f32 %v1248, %v1447
  %v1451 = vmul.f32 %v1251, %v1447
  %v1452 = vlaneseq
  %v1453 = vshrl.u32 %v1452, 7
  %v1454 = vsub.s32 1, %v1453
  %v1455 = vrot.slane %v1443, %v1454
  %v1456 = vadd.f32 %v1448, %v1455
  %v1457 = vadd.f32 %v1449, %v1455
  %v1458 = vadd.f32 %v1450, %v1455
  %v1459 = vadd.f32 %v1451, %v1455
  %v1460 = vadd.f32 %v1456, %v540
  %v1461 = vadd.f32 %v1457, %v541
  %v1462 = vadd.f32 %v1458, %v542
  %v1463 = vadd.f32 %v1459, %v543
  %1464 = vst [vmem:[%s6] sm:$0xff] %v1460
  %1465 = vst [vmem:[%s6 + $0x8] sm:$0xff] %v1461
  %1466 = vst [vmem:[%s6 + $0x10] sm:$0xff] %v1462
  %1467 = vst [vmem:[%s6 + $0x18] sm:$0xff] %v1463
  // Predicated region
  $region26: #{resnet_block.1} parent=0 // pred_check
    _
  $region27: #{resnet_block.1} parent=0 // pred_check_branch
    %1469 = sbr.rel (0) target = $region29
  $region28: #{resnet_block.1} parent=0 // pred_region
    _
  $region29: #{resnet_block.1} parent=0 // pred_fallthru
    _
  // Predicated region
  $region30: #{resnet_block.1} parent=0 // pred_check
    _
  $region31: #{resnet_block.1} parent=0 // pred_check_branch
    %1471 = sbr.rel (0) target = $region33
  $region32: #{resnet_block.1} parent=0 // pred_region
    _
  $region33: #{resnet_block.1} parent=0 // pred_fallthru
    _

</llo_original>
